<compile_context>
chip_gen: v5e
topology: v5e:2x2
jax: 0.10.0
libtpu: 0.0.40
codegen_flags: <defaults>
</compile_context>

<pallas_src>
import functools

import jax
import jax.numpy as jnp
from jax.experimental import pallas as pl
from jax.experimental.pallas import tpu as pltpu

EPS = 1e-5
LANE = 128   # output-channel dim is padded to a multiple of the TPU lane width


def _round_up(x, m):
    return ((x + m - 1) // m) * m


@functools.lru_cache(maxsize=1)
def _vmem_cap():
    # Derive the VMEM budget from the actual part (128 MiB on v5e/v6e, 64 MiB
    # on v7x) and leave ~25% headroom for compiler scratch.
    try:
        cap = int(pltpu.get_tpu_info().vmem_capacity_bytes)
    except Exception:
        cap = 64 << 20
    return max(32 << 20, (cap * 3) // 4)


def fold_bn(gamma, beta, mean, var):
    scale = gamma / jnp.sqrt(var + EPS)
    bias = beta - mean * scale
    return scale, bias


# ======================= fused stride-1 3x3 conv kernel ======================
def _conv3x3_s1_kernel(taps, add_res, relu, *refs):
    """out = act( conv3x3(x)*scale + bias [+ residual] ) for one (image, c-block).

    The padded image is a resident VMEM slab of flattened rows; each of the 9
    taps is a statically shifted slice of it, fed to the MXU in bf16 with f32
    accumulation.  BN affine / residual / ReLU run in the f32 epilogue.
    """
    if add_res:
        x_ref, w_ref, scale_ref, bias_ref, res_ref, o_ref = refs
    else:
        x_ref, w_ref, scale_ref, bias_ref, o_ref = refs
    rows = o_ref.shape[1]                       # number of flattened output rows
    acc = None
    for t, off in enumerate(taps):              # 9 static offsets: di*Wp + dj
        tap = x_ref[0, pl.ds(off, rows), :]     # (rows, Cin) bf16, static slice
        part = jnp.dot(tap, w_ref[t], preferred_element_type=jnp.float32)
        acc = part if acc is None else acc + part
    out = acc * scale_ref[...] + bias_ref[...]  # BN affine in f32
    if add_res:
        out = out + res_ref[0].astype(jnp.float32)
    if relu:
        out = jnp.maximum(out, 0.0)
    o_ref[0] = out.astype(o_ref.dtype)


def _pad_and_flatten_rows(x_nhwc, rows_needed):
    """(N,H,W,C) -> zero-pad spatial by 1, flatten (Hp*Wp) rows, pad to rows_needed."""
    N, H, W, C = x_nhwc.shape
    xp = jnp.pad(x_nhwc, ((0, 0), (1, 1), (1, 1), (0, 0)))
    xp = xp.reshape(N, (H + 2) * (W + 2), C)
    return jnp.pad(xp, ((0, 0), (0, rows_needed - (H + 2) * (W + 2)), (0, 0)))


def _to_z_rows(a_nhwc, Wp, Lz, Cpad):
    """(N,Ho,Wo,C) -> (N,Lz,Cpad) in the flattened padded-row layout of the conv out."""
    N, Ho, Wo, C = a_nhwc.shape
    a = jnp.pad(a_nhwc, ((0, 0), (0, 0), (0, Wp - Wo), (0, Cpad - C)))
    a = a.reshape(N, Ho * Wp, Cpad)
    return jnp.pad(a, ((0, 0), (0, Lz - Ho * Wp), (0, 0)))


def _z_extract(z, Ho, Wo, Wp):
    """(N,Lz,Cpad) flattened-row conv output -> (N,Ho,Wo,Cpad)."""
    N = z.shape[0]
    z = z[:, :Ho * Wp, :].reshape(N, Ho, Wp, -1)
    return z[:, :, :Wo, :]


def conv3x3_s1_fused(x_nhwc, w_oihw, bn_params, relu, residual=None,
                     out_dtype=jnp.float32):
    """3x3 / stride-1 / pad-1 conv + BN (+residual) (+ReLU) in one Pallas kernel.

    No im2col patch matrix in HBM: the 9 taps are shifted slices of a resident
    flattened-row slab.  Output channels padded to a multiple of 128 so stores
    are full-lane.  Returns (N, H, W, Cpad).
    """
    N, H, W, Cin = x_nhwc.shape
    Cout, Cin_w = w_oihw.shape[:2]
    assert Cin_w == Cin
    Cpad = _round_up(Cout, LANE)
    Wp = W + 2
    Lz = _round_up(H * Wp, 16)          # flattened output rows computed per image
    Lin = Lz + 2 * Wp + 2               # + halo for the largest tap offset

    x_rows = _pad_and_flatten_rows(x_nhwc.astype(jnp.bfloat16), Lin)  # (N,Lin,Cin)

    # Weights as (9, Cin, Cpad) bf16; BN scale/bias stay f32 for the epilogue.
    w_taps = jnp.transpose(w_oihw, (2, 3, 1, 0)).reshape(9, Cin, Cout)
    w_taps = jnp.pad(w_taps, ((0, 0), (0, 0), (0, Cpad - Cout))).astype(jnp.bfloat16)
    scale, bias = fold_bn(*bn_params)
    scale2 = jnp.pad(scale, (0, Cpad - Cout)).reshape(1, Cpad).astype(jnp.float32)
    bias2 = jnp.pad(bias, (0, Cpad - Cout)).reshape(1, Cpad).astype(jnp.float32)

    add_res = residual is not None
    inputs = [x_rows, w_taps, scale2, bias2]
    in_specs = [
        pl.BlockSpec((1, Lin, Cin), lambda n, c: (n, 0, 0)),    # resident per image
        pl.BlockSpec((9, Cin, LANE), lambda n, c: (0, 0, c)),
        pl.BlockSpec((1, LANE), lambda n, c: (0, c)),
        pl.BlockSpec((1, LANE), lambda n, c: (0, c)),
    ]
    if add_res:
        inputs.append(_to_z_rows(residual.astype(jnp.bfloat16), Wp, Lz, Cpad))
        in_specs.append(pl.BlockSpec((1, Lz, LANE), lambda n, c: (n, 0, c)))

    taps = tuple(di * Wp + dj for di in range(3) for dj in range(3))
    kernel = functools.partial(_conv3x3_s1_kernel, taps, add_res, relu)

    out_bytes = jnp.dtype(out_dtype).itemsize
    est_vmem = (2 * Lin * Cin * 2            # double-buffered resident slab
                + 9 * Cin * LANE * 2 * 2     # weights
                + 4 * LANE * 4
                + 2 * Lz * LANE * out_bytes  # output block
                + Lz * LANE * 4              # f32 accumulator
                + 2 * Lz * Cin * 2           # tap slice scratch
                + (2 * Lz * LANE * 2 if add_res else 0))
    vmem_limit = int(min(max(4 * est_vmem, 32 << 20), _vmem_cap()))
    cost = pl.CostEstimate(
        flops=2 * N * Lz * 9 * Cin * Cpad, transcendentals=0,
        bytes_accessed=int(N * (Lin * Cin * 2 + Lz * Cpad * out_bytes
                                + (Lz * Cpad * 2 if add_res else 0)
                                + 9 * Cin * Cpad * 2)))

    z = pl.pallas_call(
        kernel,
        out_shape=jax.ShapeDtypeStruct((N, Lz, Cpad), out_dtype),
        grid=(N, Cpad // LANE),
        in_specs=in_specs,
        out_specs=pl.BlockSpec((1, Lz, LANE), lambda n, c: (n, 0, c)),
        compiler_params=pltpu.CompilerParams(
            dimension_semantics=("parallel", "parallel"),
            vmem_limit_bytes=vmem_limit),
        cost_estimate=cost,
    )(*inputs)
    return _z_extract(z, H, W, Wp)            # (N, H, W, Cpad)


# =================== fallback fused matmul (im2col / 1x1) ====================
def _matmul_bn_kernel(relu, p_ref, w_ref, scale_ref, bias_ref, o_ref):
    acc = jnp.dot(p_ref[...], w_ref[...], preferred_element_type=jnp.float32)
    out = acc * scale_ref[...] + bias_ref[...]
    if relu:
        out = jnp.maximum(out, 0.0)
    o_ref[...] = out.astype(o_ref.dtype)


def fused_matmul(patches, w_mat, scale, bias, relu, out_dtype=jnp.float32, tm=512):
    """(M,K) @ (K,Cout) with BN affine (+ReLU) fused; returns lane-padded (M,Cpad)."""
    M, K = patches.shape
    Kw, Cout = w_mat.shape
    assert Kw == K
    Cpad = _round_up(Cout, LANE)
    if Cpad != Cout:
        w_mat = jnp.pad(w_mat, ((0, 0), (0, Cpad - Cout)))
        scale = jnp.pad(scale, (0, Cpad - Cout))
        bias = jnp.pad(bias, (0, Cpad - Cout))
    w_bf = w_mat.astype(jnp.bfloat16)
    scale2 = scale.reshape(1, Cpad).astype(jnp.float32)
    bias2 = bias.reshape(1, Cpad).astype(jnp.float32)
    patches_bf = patches.astype(jnp.bfloat16)

    # Keep >= 2 grid steps when possible so both v7x TensorCores get work;
    # Pallas masks the ragged tail block, no pad/slice round trips.
    nblk = pl.cdiv(M, tm)
    if nblk == 1 and M > 16:
        nblk = 2
    tm_eff = min(M, _round_up(pl.cdiv(M, nblk), 16))
    grid_m = pl.cdiv(M, tm_eff)

    out_bytes = jnp.dtype(out_dtype).itemsize
    est_vmem = (2 * tm_eff * K * 2            # double-buffered bf16 patch tile
                + K * Cpad * 2                # resident bf16 weights (fetched once)
                + 4 * Cpad * 4
                + 2 * tm_eff * Cpad * out_bytes
                + tm_eff * Cpad * 4)          # f32 accumulator
    vmem_limit = int(min(max(4 * est_vmem, 32 << 20), _vmem_cap()))
    cost = pl.CostEstimate(
        flops=2 * M * K * Cpad, transcendentals=0,
        bytes_accessed=int(M * K * 2 + K * Cpad * 2 + M * Cpad * out_bytes))

    return pl.pallas_call(
        functools.partial(_matmul_bn_kernel, relu),
        out_shape=jax.ShapeDtypeStruct((M, Cpad), out_dtype),
        grid=(grid_m,),
        in_specs=[
            pl.BlockSpec((tm_eff, K), lambda i: (i, 0)),
            pl.BlockSpec((K, Cpad), lambda i: (0, 0)),    # weights stay resident
            pl.BlockSpec((1, Cpad), lambda i: (0, 0)),
            pl.BlockSpec((1, Cpad), lambda i: (0, 0)),
        ],
        out_specs=pl.BlockSpec((tm_eff, Cpad), lambda i: (i, 0)),
        compiler_params=pltpu.CompilerParams(
            dimension_semantics=("parallel",),
            vmem_limit_bytes=vmem_limit),
        cost_estimate=cost,
    )(patches_bf, w_bf, scale2, bias2)


def im2col(x_nhwc, k, stride, padding):
    # Only used by the stride!=1 3x3 fallback path.
    N, H, W, C = x_nhwc.shape
    xp = jnp.pad(x_nhwc, ((0, 0), (padding, padding), (padding, padding), (0, 0)))
    Ho = (H + 2 * padding - k) // stride + 1
    Wo = (W + 2 * padding - k) // stride + 1
    cols = [xp[:, di:di + stride * Ho:stride, dj:dj + stride * Wo:stride, :]
            for di in range(k) for dj in range(k)]
    cols = jnp.concatenate(cols, axis=-1)
    return cols.reshape(N * Ho * Wo, k * k * C), (N, Ho, Wo)


def conv_weight_to_matrix(w_oihw):
    Cout = w_oihw.shape[0]
    return jnp.transpose(w_oihw, (2, 3, 1, 0)).reshape(-1, Cout)


def conv3x3_fallback(x_nhwc, w_oihw, bn_params, stride, relu, out_dtype):
    # TODO(synk): stride-2 3x3 conv still uses the wrapper-level im2col matrix.
    patches, (N, Ho, Wo) = im2col(x_nhwc, 3, stride, 1)
    scale, bias = fold_bn(*bn_params)
    out = fused_matmul(patches, conv_weight_to_matrix(w_oihw), scale, bias,
                       relu=relu, out_dtype=out_dtype)
    return out.reshape(N, Ho, Wo, -1)


def conv1x1_bn(x_nhwc, w_oihw, bn_params, stride, out_dtype):
    # 1x1 projection shortcut: no patch inflation, just a strided subsample + matmul.
    xs = x_nhwc[:, ::stride, ::stride, :]
    N, Ho, Wo, Cin = xs.shape
    patches = xs.reshape(N * Ho * Wo, Cin)
    w_mat = w_oihw.reshape(w_oihw.shape[0], Cin).T        # (Cin, Cout)
    scale, bias = fold_bn(*bn_params)
    out = fused_matmul(patches, w_mat, scale, bias, relu=False, out_dtype=out_dtype)
    return out.reshape(N, Ho, Wo, -1)


# =============================== BasicBlock ==================================
def basic_block_forward(x_nchw, params, stride):
    # Single fused NCHW->NHWC transpose + bf16 cast (MXU input dtype).
    x = jnp.transpose(x_nchw, (0, 2, 3, 1)).astype(jnp.bfloat16)
    N, H, W, Cin = x.shape
    planes = params["w1"].shape[0]
    Cpad = _round_up(planes, LANE)

    # conv1 -> bn1 -> relu; output kept bf16 and lane-padded to Cpad channels.
    if stride == 1:
        h1 = conv3x3_s1_fused(x, params["w1"], params["bn1"], relu=True,
                              out_dtype=jnp.bfloat16)
    else:
        h1 = conv3x3_fallback(x, params["w1"], params["bn1"], stride, relu=True,
                              out_dtype=jnp.bfloat16)

    # Shortcut branch, bf16, lane-padded, same (N, Ho, Wo) grid as h1.
    if "w_sc" in params:
        sc = conv1x1_bn(x, params["w_sc"], params["bn_sc"], stride,
                        out_dtype=jnp.bfloat16)
    else:
        # Identity shortcut: the module guarantees stride == 1 and Cin == planes.
        sc = jnp.pad(x, ((0, 0), (0, 0), (0, 0), (0, Cpad - Cin)))

    # conv2 -> bn2 -> (+shortcut) -> relu, fused in one kernel.  w2 gets zero
    # rows for the padded input channels so h1 stays lane-padded throughout.
    w2 = jnp.pad(params["w2"], ((0, 0), (0, Cpad - planes), (0, 0), (0, 0)))
    out = conv3x3_s1_fused(h1, w2, params["bn2"], relu=True, residual=sc,
                           out_dtype=jnp.float32)
    out = out[..., :planes]
    return jnp.transpose(out, (0, 3, 1, 2))               # back to NCHW, f32


# ----------------------------- pure-JAX reference ----------------------------
def _ref_conv(x_nhwc, w_oihw, stride):
    k = w_oihw.shape[-1]
    p = (k - 1) // 2
    return jax.lax.conv_general_dilated(
        x_nhwc, jnp.transpose(w_oihw, (2, 3, 1, 0)), (stride, stride),
        [(p, p), (p, p)], dimension_numbers=("NHWC", "HWIO", "NHWC"))


def _ref_bn(x, bn_params):
    g, b, m, v = bn_params
    return (x - m) / jnp.sqrt(v + EPS) * g + b


def reference_forward(x_nchw, params, stride):
    x = jnp.transpose(x_nchw, (0, 2, 3, 1)).astype(jnp.float32)
    if "w_sc" in params:
        sc = _ref_bn(_ref_conv(x, params["w_sc"], stride), params["bn_sc"])
    else:
        sc = x
    h = jnp.maximum(_ref_bn(_ref_conv(x, params["w1"], stride), params["bn1"]), 0.0)
    h = _ref_bn(_ref_conv(h, params["w2"], 1), params["bn2"]) + sc
    h = jnp.maximum(h, 0.0)
    return jnp.transpose(h, (0, 3, 1, 2))


# ----------------------------- parameter init --------------------------------
def init_params(key, in_planes, planes, stride):
    ks = jax.random.split(key, 16)

    def bn_init(k_g, k_b, k_m, k_v, c):
        gamma = 1.0 + 0.1 * jax.random.normal(k_g, (c,), jnp.float32)
        beta = 0.1 * jax.random.normal(k_b, (c,), jnp.float32)
        mean = 0.1 * jax.random.normal(k_m, (c,), jnp.float32)
        var = 1.0 + 0.1 * jax.random.uniform(k_v, (c,), jnp.float32)
        return (gamma, beta, mean, var)

    params = {
        "w1": 0.1 * jax.random.normal(ks[0], (planes, in_planes, 3, 3), jnp.float32),
        "bn1": bn_init(ks[1], ks[2], ks[3], ks[4], planes),
        "w2": 0.1 * jax.random.normal(ks[5], (planes, planes, 3, 3), jnp.float32),
        "bn2": bn_init(ks[6], ks[7], ks[8], ks[9], planes),
    }
    if stride != 1 or in_planes != planes:
        params["w_sc"] = 0.1 * jax.random.normal(
            ks[10], (planes, in_planes, 1, 1), jnp.float32)
        params["bn_sc"] = bn_init(ks[11], ks[12], ks[13], ks[14], planes)
    return params


# ----------------------------------- main ------------------------------------
if __name__ == "__main__":
    key = jax.random.PRNGKey(0)
    k_x, k_p, k_x2, k_p2 = jax.random.split(key, 4)

    # Case A: down-sampling block (stride 2, projection shortcut).  Exercises
    # the im2col fallback for conv1, the 1x1 shortcut matmul, and the fused
    # stride-1 conv kernel (with residual) for conv2.
    in_planes, planes, stride = 4, 8, 2
    x = jax.random.normal(k_x, (2, in_planes, 16, 16), jnp.float32)      # NCHW
    params = init_params(k_p, in_planes, planes, stride)
    fwd = jax.jit(functools.partial(basic_block_forward, stride=stride))
    out = jax.block_until_ready(fwd(x, params))
    ref = jax.block_until_ready(reference_forward(x, params, stride))
    assert out.shape == (2, planes, 8, 8), out.shape
    assert jnp.allclose(out, ref, rtol=2e-2, atol=4e-2), \
        float(jnp.max(jnp.abs(out - ref)))

    # Case B: identity block (stride 1, no projection).  Exercises the fused
    # stride-1 conv kernel for both convs and the bf16 identity residual.
    in_planes2, planes2, stride2 = 8, 8, 1
    x2 = jax.random.normal(k_x2, (2, in_planes2, 16, 16), jnp.float32)
    params2 = init_params(k_p2, in_planes2, planes2, stride2)
    fwd2 = jax.jit(functools.partial(basic_block_forward, stride=stride2))
    out2 = jax.block_until_ready(fwd2(x2, params2))
    ref2 = jax.block_until_ready(reference_forward(x2, params2, stride2))
    assert out2.shape == (2, planes2, 16, 16), out2.shape
    assert jnp.allclose(out2, ref2, rtol=2e-2, atol=4e-2), \
        float(jnp.max(jnp.abs(out2 - ref2)))

    print("KERNEL_OK")
</pallas_src>

<mosaic_0001>
module attributes {stable_mosaic.version = 11 : i64} {
  func.func @_matmul_bn_kernel(%arg0: i32, %arg1: memref<64x36xbf16, #tpu.memory_space<vmem>>, %arg2: memref<36x128xbf16, #tpu.memory_space<vmem>>, %arg3: memref<1x128xf32, #tpu.memory_space<vmem>>, %arg4: memref<1x128xf32, #tpu.memory_space<vmem>>, %arg5: memref<64x128xbf16, #tpu.memory_space<vmem>>) attributes {dimension_semantics = [#tpu.dimension_semantics<parallel>], iteration_bounds = array<i64: 2>, scalar_prefetch = 0 : i64, scratch_operands = 0 : i64, tpu.core_type = #tpu.core_type<tc>, window_params = [{transform_indices = @transform_0, window_bounds = array<i64: 64, 36>}, {pipeline_mode = #tpu.pipeline_mode<synchronous>, transform_indices = @transform_1, window_bounds = array<i64: 36, 128>}, {pipeline_mode = #tpu.pipeline_mode<synchronous>, transform_indices = @transform_2, window_bounds = array<i64: 1, 128>}, {pipeline_mode = #tpu.pipeline_mode<synchronous>, transform_indices = @transform_3, window_bounds = array<i64: 1, 128>}, {transform_indices = @transform_4, window_bounds = array<i64: 64, 128>}]} {
    %c0 = arith.constant 0 : index
    %c0_0 = arith.constant 0 : index
    %0 = vector.load %arg1[%c0, %c0_0] : memref<64x36xbf16, #tpu.memory_space<vmem>>, vector<64x36xbf16>
    %c0_1 = arith.constant 0 : index
    %c0_2 = arith.constant 0 : index
    %1 = vector.load %arg2[%c0_1, %c0_2] : memref<36x128xbf16, #tpu.memory_space<vmem>>, vector<36x128xbf16>
    %cst = arith.constant dense<0.000000e+00> : vector<64x128xf32>
    %2 = tpu.matmul %0, %1, %cst {dimension_numbers = #tpu.dot_dimension_numbers<[1], [0], [0], [1], [0, 0, 1, 1], [], []>} : vector<64x36xbf16>, vector<36x128xbf16>, vector<64x128xf32> -> vector<64x128xf32>
    %c0_3 = arith.constant 0 : index
    %c0_4 = arith.constant 0 : index
    %3 = vector.load %arg3[%c0_3, %c0_4] : memref<1x128xf32, #tpu.memory_space<vmem>>, vector<1x128xf32>
    %4 = vector.broadcast %3 : vector<1x128xf32> to vector<64x128xf32>
    %5 = arith.mulf %2, %4 : vector<64x128xf32>
    %c0_5 = arith.constant 0 : index
    %c0_6 = arith.constant 0 : index
    %6 = vector.load %arg4[%c0_5, %c0_6] : memref<1x128xf32, #tpu.memory_space<vmem>>, vector<1x128xf32>
    %7 = vector.broadcast %6 : vector<1x128xf32> to vector<64x128xf32>
    %8 = arith.addf %5, %7 : vector<64x128xf32>
    %cst_7 = arith.constant 0.000000e+00 : f32
    %9 = vector.broadcast %cst_7 : f32 to vector<64x128xf32>
    %10 = arith.maximumf %8, %9 : vector<64x128xf32>
    %11 = arith.truncf %10 : vector<64x128xf32> to vector<64x128xbf16>
    %c0_8 = arith.constant 0 : index
    %c0_9 = arith.constant 0 : index
    %12 = vector.load %arg5[%c0_8, %c0_9] : memref<64x128xbf16, #tpu.memory_space<vmem>>, vector<64x128xbf16>
    tpu.vector_store %arg5[%c0_8, %c0_9], %11 {strides = array<i32>} : memref<64x128xbf16, #tpu.memory_space<vmem>>, vector<64x128xbf16>,
    return
  }
  func.func @transform_0(%arg0: i32) -> (i32, i32) {
    %c0_i32 = arith.constant 0 : i32
    %c0_i32_0 = arith.constant 0 : i32
    return %arg0, %c0_i32 : i32, i32
  }
  func.func @transform_1(%arg0: i32) -> (i32, i32) {
    %c0_i32 = arith.constant 0 : i32
    %c0_i32_0 = arith.constant 0 : i32
    %c0_i32_1 = arith.constant 0 : i32
    return %c0_i32, %c0_i32_0 : i32, i32
  }
  func.func @transform_2(%arg0: i32) -> (i32, i32) {
    %c0_i32 = arith.constant 0 : i32
    %c0_i32_0 = arith.constant 0 : i32
    %c0_i32_1 = arith.constant 0 : i32
    return %c0_i32, %c0_i32_0 : i32, i32
  }
  func.func @transform_3(%arg0: i32) -> (i32, i32) {
    %c0_i32 = arith.constant 0 : i32
    %c0_i32_0 = arith.constant 0 : i32
    %c0_i32_1 = arith.constant 0 : i32
    return %c0_i32, %c0_i32_0 : i32, i32
  }
  func.func @transform_4(%arg0: i32) -> (i32, i32) {
    %c0_i32 = arith.constant 0 : i32
    %c0_i32_0 = arith.constant 0 : i32
    return %arg0, %c0_i32 : i32, i32
  }
}

module attributes {stable_mosaic.version = 11 : i64} {
  func.func @_matmul_bn_kernel(%arg0: i32, %arg1: memref<64x4xbf16, #tpu.memory_space<vmem>>, %arg2: memref<4x128xbf16, #tpu.memory_space<vmem>>, %arg3: memref<1x128xf32, #tpu.memory_space<vmem>>, %arg4: memref<1x128xf32, #tpu.memory_space<vmem>>, %arg5: memref<64x128xbf16, #tpu.memory_space<vmem>>) attributes {dimension_semantics = [#tpu.dimension_semantics<parallel>], iteration_bounds = array<i64: 2>, scalar_prefetch = 0 : i64, scratch_operands = 0 : i64, tpu.core_type = #tpu.core_type<tc>, window_params = [{transform_indices = @transform_0, window_bounds = array<i64: 64, 4>}, {pipeline_mode = #tpu.pipeline_mode<synchronous>, transform_indices = @transform_1, window_bounds = array<i64: 4, 128>}, {pipeline_mode = #tpu.pipeline_mode<synchronous>, transform_indices = @transform_2, window_bounds = array<i64: 1, 128>}, {pipeline_mode = #tpu.pipeline_mode<synchronous>, transform_indices = @transform_3, window_bounds = array<i64: 1, 128>}, {transform_indices = @transform_4, window_bounds = array<i64: 64, 128>}]} {
    %c0 = arith.constant 0 : index
    %c0_0 = arith.constant 0 : index
    %0 = vector.load %arg1[%c0, %c0_0] : memref<64x4xbf16, #tpu.memory_space<vmem>>, vector<64x4xbf16>
    %c0_1 = arith.constant 0 : index
    %c0_2 = arith.constant 0 : index
    %1 = vector.load %arg2[%c0_1, %c0_2] : memref<4x128xbf16, #tpu.memory_space<vmem>>, vector<4x128xbf16>
    %cst = arith.constant dense<0.000000e+00> : vector<64x128xf32>
    %2 = tpu.matmul %0, %1, %cst {dimension_numbers = #tpu.dot_dimension_numbers<[1], [0], [0], [1], [0, 0, 1, 1], [], []>} : vector<64x4xbf16>, vector<4x128xbf16>, vector<64x128xf32> -> vector<64x128xf32>
    %c0_3 = arith.constant 0 : index
    %c0_4 = arith.constant 0 : index
    %3 = vector.load %arg3[%c0_3, %c0_4] : memref<1x128xf32, #tpu.memory_space<vmem>>, vector<1x128xf32>
    %4 = vector.broadcast %3 : vector<1x128xf32> to vector<64x128xf32>
    %5 = arith.mulf %2, %4 : vector<64x128xf32>
    %c0_5 = arith.constant 0 : index
    %c0_6 = arith.constant 0 : index
    %6 = vector.load %arg4[%c0_5, %c0_6] : memref<1x128xf32, #tpu.memory_space<vmem>>, vector<1x128xf32>
    %7 = vector.broadcast %6 : vector<1x128xf32> to vector<64x128xf32>
    %8 = arith.addf %5, %7 : vector<64x128xf32>
    %9 = arith.truncf %8 : vector<64x128xf32> to vector<64x128xbf16>
    %c0_7 = arith.constant 0 : index
    %c0_8 = arith.constant 0 : index
    %10 = vector.load %arg5[%c0_7, %c0_8] : memref<64x128xbf16, #tpu.memory_space<vmem>>, vector<64x128xbf16>
    tpu.vector_store %arg5[%c0_7, %c0_8], %9 {strides = array<i32>} : memref<64x128xbf16, #tpu.memory_space<vmem>>, vector<64x128xbf16>,
    return
  }
  func.func @transform_0(%arg0: i32) -> (i32, i32) {
    %c0_i32 = arith.constant 0 : i32
    %c0_i32_0 = arith.constant 0 : i32
    return %arg0, %c0_i32 : i32, i32
  }
  func.func @transform_1(%arg0: i32) -> (i32, i32) {
    %c0_i32 = arith.constant 0 : i32
    %c0_i32_0 = arith.constant 0 : i32
    %c0_i32_1 = arith.constant 0 : i32
    return %c0_i32, %c0_i32_0 : i32, i32
  }
  func.func @transform_2(%arg0: i32) -> (i32, i32) {
    %c0_i32 = arith.constant 0 : i32
    %c0_i32_0 = arith.constant 0 : i32
    %c0_i32_1 = arith.constant 0 : i32
    return %c0_i32, %c0_i32_0 : i32, i32
  }
  func.func @transform_3(%arg0: i32) -> (i32, i32) {
    %c0_i32 = arith.constant 0 : i32
    %c0_i32_0 = arith.constant 0 : i32
    %c0_i32_1 = arith.constant 0 : i32
    return %c0_i32, %c0_i32_0 : i32, i32
  }
  func.func @transform_4(%arg0: i32) -> (i32, i32) {
    %c0_i32 = arith.constant 0 : i32
    %c0_i32_0 = arith.constant 0 : i32
    return %arg0, %c0_i32 : i32, i32
  }
}

module attributes {stable_mosaic.version = 11 : i64} {
  func.func @_conv3x3_s1_kernel(%arg0: i32, %arg1: i32, %arg2: memref<1x102x128xbf16, #tpu.memory_space<vmem>>, %arg3: memref<9x128x128xbf16, #tpu.memory_space<vmem>>, %arg4: memref<1x128xf32, #tpu.memory_space<vmem>>, %arg5: memref<1x128xf32, #tpu.memory_space<vmem>>, %arg6: memref<1x80x128xbf16, #tpu.memory_space<vmem>>, %arg7: memref<1x80x128xf32, #tpu.memory_space<vmem>>) attributes {dimension_semantics = [#tpu.dimension_semantics<parallel>, #tpu.dimension_semantics<parallel>], iteration_bounds = array<i64: 2, 1>, scalar_prefetch = 0 : i64, scratch_operands = 0 : i64, tpu.core_type = #tpu.core_type<tc>, window_params = [{transform_indices = @transform_0, window_bounds = array<i64: 1, 102, 128>}, {transform_indices = @transform_1, window_bounds = array<i64: 9, 128, 128>}, {transform_indices = @transform_2, window_bounds = array<i64: 1, 128>}, {transform_indices = @transform_3, window_bounds = array<i64: 1, 128>}, {transform_indices = @transform_4, window_bounds = array<i64: 1, 80, 128>}, {transform_indices = @transform_5, window_bounds = array<i64: 1, 80, 128>}]} {
    %c0 = arith.constant 0 : index
    %c0_0 = arith.constant 0 : index
    %c0_1 = arith.constant 0 : index
    %0 = vector.load %arg2[%c0, %c0_0, %c0_1] : memref<1x102x128xbf16, #tpu.memory_space<vmem>>, vector<1x80x128xbf16>
    %1 = vector.shape_cast %0 : vector<1x80x128xbf16> to vector<80x128xbf16>
    %c0_2 = arith.constant 0 : index
    %c0_3 = arith.constant 0 : index
    %c0_4 = arith.constant 0 : index
    %2 = vector.load %arg3[%c0_2, %c0_3, %c0_4] : memref<9x128x128xbf16, #tpu.memory_space<vmem>>, vector<1x128x128xbf16>
    %3 = vector.shape_cast %2 : vector<1x128x128xbf16> to vector<128x128xbf16>
    %cst = arith.constant dense<0.000000e+00> : vector<80x128xf32>
    %4 = tpu.matmul %1, %3, %cst {dimension_numbers = #tpu.dot_dimension_numbers<[1], [0], [0], [1], [0, 0, 1, 1], [], []>} : vector<80x128xbf16>, vector<128x128xbf16>, vector<80x128xf32> -> vector<80x128xf32>
    %c0_5 = arith.constant 0 : index
    %c1 = arith.constant 1 : index
    %c0_6 = arith.constant 0 : index
    %5 = vector.load %arg2[%c0_5, %c1, %c0_6] : memref<1x102x128xbf16, #tpu.memory_space<vmem>>, vector<1x80x128xbf16>
    %6 = vector.shape_cast %5 : vector<1x80x128xbf16> to vector<80x128xbf16>
    %c1_7 = arith.constant 1 : index
    %c0_8 = arith.constant 0 : index
    %c0_9 = arith.constant 0 : index
    %7 = vector.load %arg3[%c1_7, %c0_8, %c0_9] : memref<9x128x128xbf16, #tpu.memory_space<vmem>>, vector<1x128x128xbf16>
    %8 = vector.shape_cast %7 : vector<1x128x128xbf16> to vector<128x128xbf16>
    %cst_10 = arith.constant dense<0.000000e+00> : vector<80x128xf32>
    %9 = tpu.matmul %6, %8, %cst_10 {dimension_numbers = #tpu.dot_dimension_numbers<[1], [0], [0], [1], [0, 0, 1, 1], [], []>} : vector<80x128xbf16>, vector<128x128xbf16>, vector<80x128xf32> -> vector<80x128xf32>
    %10 = arith.addf %4, %9 : vector<80x128xf32>
    %c0_11 = arith.constant 0 : index
    %c2 = arith.constant 2 : index
    %c0_12 = arith.constant 0 : index
    %11 = vector.load %arg2[%c0_11, %c2, %c0_12] : memref<1x102x128xbf16, #tpu.memory_space<vmem>>, vector<1x80x128xbf16>
    %12 = vector.shape_cast %11 : vector<1x80x128xbf16> to vector<80x128xbf16>
    %c2_13 = arith.constant 2 : index
    %c0_14 = arith.constant 0 : index
    %c0_15 = arith.constant 0 : index
    %13 = vector.load %arg3[%c2_13, %c0_14, %c0_15] : memref<9x128x128xbf16, #tpu.memory_space<vmem>>, vector<1x128x128xbf16>
    %14 = vector.shape_cast %13 : vector<1x128x128xbf16> to vector<128x128xbf16>
    %cst_16 = arith.constant dense<0.000000e+00> : vector<80x128xf32>
    %15 = tpu.matmul %12, %14, %cst_16 {dimension_numbers = #tpu.dot_dimension_numbers<[1], [0], [0], [1], [0, 0, 1, 1], [], []>} : vector<80x128xbf16>, vector<128x128xbf16>, vector<80x128xf32> -> vector<80x128xf32>
    %16 = arith.addf %10, %15 : vector<80x128xf32>
    %c0_17 = arith.constant 0 : index
    %c10 = arith.constant 10 : index
    %c0_18 = arith.constant 0 : index
    %17 = vector.load %arg2[%c0_17, %c10, %c0_18] : memref<1x102x128xbf16, #tpu.memory_space<vmem>>, vector<1x80x128xbf16>
    %18 = vector.shape_cast %17 : vector<1x80x128xbf16> to vector<80x128xbf16>
    %c3 = arith.constant 3 : index
    %c0_19 = arith.constant 0 : index
    %c0_20 = arith.constant 0 : index
    %19 = vector.load %arg3[%c3, %c0_19, %c0_20] : memref<9x128x128xbf16, #tpu.memory_space<vmem>>, vector<1x128x128xbf16>
    %20 = vector.shape_cast %19 : vector<1x128x128xbf16> to vector<128x128xbf16>
    %cst_21 = arith.constant dense<0.000000e+00> : vector<80x128xf32>
    %21 = tpu.matmul %18, %20, %cst_21 {dimension_numbers = #tpu.dot_dimension_numbers<[1], [0], [0], [1], [0, 0, 1, 1], [], []>} : vector<80x128xbf16>, vector<128x128xbf16>, vector<80x128xf32> -> vector<80x128xf32>
    %22 = arith.addf %16, %21 : vector<80x128xf32>
    %c0_22 = arith.constant 0 : index
    %c11 = arith.constant 11 : index
    %c0_23 = arith.constant 0 : index
    %23 = vector.load %arg2[%c0_22, %c11, %c0_23] : memref<1x102x128xbf16, #tpu.memory_space<vmem>>, vector<1x80x128xbf16>
    %24 = vector.shape_cast %23 : vector<1x80x128xbf16> to vector<80x128xbf16>
    %c4 = arith.constant 4 : index
    %c0_24 = arith.constant 0 : index
    %c0_25 = arith.constant 0 : index
    %25 = vector.load %arg3[%c4, %c0_24, %c0_25] : memref<9x128x128xbf16, #tpu.memory_space<vmem>>, vector<1x128x128xbf16>
    %26 = vector.shape_cast %25 : vector<1x128x128xbf16> to vector<128x128xbf16>
    %cst_26 = arith.constant dense<0.000000e+00> : vector<80x128xf32>
    %27 = tpu.matmul %24, %26, %cst_26 {dimension_numbers = #tpu.dot_dimension_numbers<[1], [0], [0], [1], [0, 0, 1, 1], [], []>} : vector<80x128xbf16>, vector<128x128xbf16>, vector<80x128xf32> -> vector<80x128xf32>
    %28 = arith.addf %22, %27 : vector<80x128xf32>
    %c0_27 = arith.constant 0 : index
    %c12 = arith.constant 12 : index
    %c0_28 = arith.constant 0 : index
    %29 = vector.load %arg2[%c0_27, %c12, %c0_28] : memref<1x102x128xbf16, #tpu.memory_space<vmem>>, vector<1x80x128xbf16>
    %30 = vector.shape_cast %29 : vector<1x80x128xbf16> to vector<80x128xbf16>
    %c5 = arith.constant 5 : index
    %c0_29 = arith.constant 0 : index
    %c0_30 = arith.constant 0 : index
    %31 = vector.load %arg3[%c5, %c0_29, %c0_30] : memref<9x128x128xbf16, #tpu.memory_space<vmem>>, vector<1x128x128xbf16>
    %32 = vector.shape_cast %31 : vector<1x128x128xbf16> to vector<128x128xbf16>
    %cst_31 = arith.constant dense<0.000000e+00> : vector<80x128xf32>
    %33 = tpu.matmul %30, %32, %cst_31 {dimension_numbers = #tpu.dot_dimension_numbers<[1], [0], [0], [1], [0, 0, 1, 1], [], []>} : vector<80x128xbf16>, vector<128x128xbf16>, vector<80x128xf32> -> vector<80x128xf32>
    %34 = arith.addf %28, %33 : vector<80x128xf32>
    %c0_32 = arith.constant 0 : index
    %c20 = arith.constant 20 : index
    %c0_33 = arith.constant 0 : index
    %35 = vector.load %arg2[%c0_32, %c20, %c0_33] : memref<1x102x128xbf16, #tpu.memory_space<vmem>>, vector<1x80x128xbf16>
    %36 = vector.shape_cast %35 : vector<1x80x128xbf16> to vector<80x128xbf16>
    %c6 = arith.constant 6 : index
    %c0_34 = arith.constant 0 : index
    %c0_35 = arith.constant 0 : index
    %37 = vector.load %arg3[%c6, %c0_34, %c0_35] : memref<9x128x128xbf16, #tpu.memory_space<vmem>>, vector<1x128x128xbf16>
    %38 = vector.shape_cast %37 : vector<1x128x128xbf16> to vector<128x128xbf16>
    %cst_36 = arith.constant dense<0.000000e+00> : vector<80x128xf32>
    %39 = tpu.matmul %36, %38, %cst_36 {dimension_numbers = #tpu.dot_dimension_numbers<[1], [0], [0], [1], [0, 0, 1, 1], [], []>} : vector<80x128xbf16>, vector<128x128xbf16>, vector<80x128xf32> -> vector<80x128xf32>
    %40 = arith.addf %34, %39 : vector<80x128xf32>
    %c0_37 = arith.constant 0 : index
    %c21 = arith.constant 21 : index
    %c0_38 = arith.constant 0 : index
    %41 = vector.load %arg2[%c0_37, %c21, %c0_38] : memref<1x102x128xbf16, #tpu.memory_space<vmem>>, vector<1x80x128xbf16>
    %42 = vector.shape_cast %41 : vector<1x80x128xbf16> to vector<80x128xbf16>
    %c7 = arith.constant 7 : index
    %c0_39 = arith.constant 0 : index
    %c0_40 = arith.constant 0 : index
    %43 = vector.load %arg3[%c7, %c0_39, %c0_40] : memref<9x128x128xbf16, #tpu.memory_space<vmem>>, vector<1x128x128xbf16>
    %44 = vector.shape_cast %43 : vector<1x128x128xbf16> to vector<128x128xbf16>
    %cst_41 = arith.constant dense<0.000000e+00> : vector<80x128xf32>
    %45 = tpu.matmul %42, %44, %cst_41 {dimension_numbers = #tpu.dot_dimension_numbers<[1], [0], [0], [1], [0, 0, 1, 1], [], []>} : vector<80x128xbf16>, vector<128x128xbf16>, vector<80x128xf32> -> vector<80x128xf32>
    %46 = arith.addf %40, %45 : vector<80x128xf32>
    %c0_42 = arith.constant 0 : index
    %c22 = arith.constant 22 : index
    %c0_43 = arith.constant 0 : index
    %47 = vector.load %arg2[%c0_42, %c22, %c0_43] : memref<1x102x128xbf16, #tpu.memory_space<vmem>>, vector<1x80x128xbf16>
    %48 = vector.shape_cast %47 : vector<1x80x128xbf16> to vector<80x128xbf16>
    %c8 = arith.constant 8 : index
    %c0_44 = arith.constant 0 : index
    %c0_45 = arith.constant 0 : index
    %49 = vector.load %arg3[%c8, %c0_44, %c0_45] : memref<9x128x128xbf16, #tpu.memory_space<vmem>>, vector<1x128x128xbf16>
    %50 = vector.shape_cast %49 : vector<1x128x128xbf16> to vector<128x128xbf16>
    %cst_46 = arith.constant dense<0.000000e+00> : vector<80x128xf32>
    %51 = tpu.matmul %48, %50, %cst_46 {dimension_numbers = #tpu.dot_dimension_numbers<[1], [0], [0], [1], [0, 0, 1, 1], [], []>} : vector<80x128xbf16>, vector<128x128xbf16>, vector<80x128xf32> -> vector<80x128xf32>
    %52 = arith.addf %46, %51 : vector<80x128xf32>
    %c0_47 = arith.constant 0 : index
    %c0_48 = arith.constant 0 : index
    %53 = vector.load %arg4[%c0_47, %c0_48] : memref<1x128xf32, #tpu.memory_space<vmem>>, vector<1x128xf32>
    %54 = vector.broadcast %53 : vector<1x128xf32> to vector<80x128xf32>
    %55 = arith.mulf %52, %54 : vector<80x128xf32>
    %c0_49 = arith.constant 0 : index
    %c0_50 = arith.constant 0 : index
    %56 = vector.load %arg5[%c0_49, %c0_50] : memref<1x128xf32, #tpu.memory_space<vmem>>, vector<1x128xf32>
    %57 = vector.broadcast %56 : vector<1x128xf32> to vector<80x128xf32>
    %58 = arith.addf %55, %57 : vector<80x128xf32>
    %c0_51 = arith.constant 0 : index
    %c0_52 = arith.constant 0 : index
    %c0_53 = arith.constant 0 : index
    %59 = vector.load %arg6[%c0_51, %c0_52, %c0_53] : memref<1x80x128xbf16, #tpu.memory_space<vmem>>, vector<1x80x128xbf16>
    %60 = vector.shape_cast %59 : vector<1x80x128xbf16> to vector<80x128xbf16>
    %61 = arith.extf %60 : vector<80x128xbf16> to vector<80x128xf32>
    %62 = arith.addf %58, %61 : vector<80x128xf32>
    %cst_54 = arith.constant 0.000000e+00 : f32
    %63 = vector.broadcast %cst_54 : f32 to vector<80x128xf32>
    %64 = arith.maximumf %62, %63 : vector<80x128xf32>
    %c0_55 = arith.constant 0 : index
    %c0_56 = arith.constant 0 : index
    %c0_57 = arith.constant 0 : index
    %65 = vector.load %arg7[%c0_55, %c0_56, %c0_57] : memref<1x80x128xf32, #tpu.memory_space<vmem>>, vector<1x80x128xf32>
    %66 = vector.shape_cast %65 : vector<1x80x128xf32> to vector<80x128xf32>
    %67 = vector.shape_cast %64 : vector<80x128xf32> to vector<1x80x128xf32>
    tpu.vector_store %arg7[%c0_55, %c0_56, %c0_57], %67 {strides = array<i32>} : memref<1x80x128xf32, #tpu.memory_space<vmem>>, vector<1x80x128xf32>,
    return
  }
  func.func @transform_0(%arg0: i32, %arg1: i32) -> (i32, i32, i32) {
    %c0_i32 = arith.constant 0 : i32
    %c0_i32_0 = arith.constant 0 : i32
    %c0_i32_1 = arith.constant 0 : i32
    return %arg0, %c0_i32, %c0_i32_0 : i32, i32, i32
  }
  func.func @transform_1(%arg0: i32, %arg1: i32) -> (i32, i32, i32) {
    %c0_i32 = arith.constant 0 : i32
    %c0_i32_0 = arith.constant 0 : i32
    %c0_i32_1 = arith.constant 0 : i32
    return %c0_i32, %c0_i32_0, %arg1 : i32, i32, i32
  }
  func.func @transform_2(%arg0: i32, %arg1: i32) -> (i32, i32) {
    %c0_i32 = arith.constant 0 : i32
    %c0_i32_0 = arith.constant 0 : i32
    return %c0_i32, %arg1 : i32, i32
  }
  func.func @transform_3(%arg0: i32, %arg1: i32) -> (i32, i32) {
    %c0_i32 = arith.constant 0 : i32
    %c0_i32_0 = arith.constant 0 : i32
    return %c0_i32, %arg1 : i32, i32
  }
  func.func @transform_4(%arg0: i32, %arg1: i32) -> (i32, i32, i32) {
    %c0_i32 = arith.constant 0 : i32
    %c0_i32_0 = arith.constant 0 : i32
    return %arg0, %c0_i32, %arg1 : i32, i32, i32
  }
  func.func @transform_5(%arg0: i32, %arg1: i32) -> (i32, i32, i32) {
    %c0_i32 = arith.constant 0 : i32
    %c0_i32_0 = arith.constant 0 : i32
    return %arg0, %c0_i32, %arg1 : i32, i32, i32
  }
}

</mosaic_0001>

<llo_original>
// kernel: basic_block_forward.3
$region0: #{basic_block_forward.3}
  #allocation0 [shape = 'u32[]', space=smem, size = 0x4, offset = 0x4, fixed_abs, tag = 'smem constant byte address 0x4 - core index']
  #allocation1 [shape = 'u32[72,128]{1,0:T(1,128)}', space=vmem, size = 0x9000, scoped, tag = 'internal scratch']
  %s0 = inlined_call_operand.vmem [shape: bf16[128,36], index: 0, kind: input, shape index: {}]
  %s1 = inlined_call_operand.vmem [shape: bf16[36,128], index: 1, kind: input, shape index: {}]
  %s2 = inlined_call_operand.vmem [shape: f32[1,128], index: 2, kind: input, shape index: {}]
  %s3 = inlined_call_operand.vmem [shape: f32[1,128], index: 3, kind: input, shape index: {}]
  %s4 = inlined_call_operand.vmem [shape: bf16[128,128], index: 4, kind: output, shape index: {}]
  %s5 = sld [smem:[#allocation0]]
  $region49: #{basic_block_forward.3} parent=0
    _
  %s7 = ssub.s32 1, %s5
  %s8 = scalar_select 0, %s7, %s5
  loop: start=0, step=1, limit=4
  $region2: #{basic_block_forward.3} parent=0 // loop_pre_header
    _
  $region3: #{basic_block_forward.3} parent=0 // loop_header
    %s10 = sphi 0, %s14
    %p11 = scmp.ge.s32.totalorder %s10, 4
    %s20 = sphi 0, %s22
    %s23 = sphi 0, %s20
    %s24 = sphi 0, %s23
    %s40 = sphi 0, %s24
    %s44 = sphi 0, %s44
    %s46 = sphi 0, %s44
    %s47 = sphi 0, %s46
    %s61 = sphi 0, %s47
    %s65 = sphi 0, %s65
    %s67 = sphi 0, %s65
    %s68 = sphi 0, %s67
    %s82 = sphi 0, %s68
    %s86 = sphi 0, %s86
    %s88 = sphi 0, %s86
    %s89 = sphi 0, %s88
    %s103 = sphi 0, %s89
    %s109 = sphi 0, %s111
    %s112 = sphi 0, %s109
    %s113 = sphi 0, %s112
    %s129 = sphi 0, %s113
  $region4: #{basic_block_forward.3} parent=0 // loop_header_branch
    %13 = sbr.rel (%p11) target = $region8
  $region5: #{basic_block_forward.3} parent=0 // loop_body
    %s15 = ssub.s32 %s10, 1
    %s16 = ssub.s32 %s10, 2
    %s17 = sadd.s32 %s10, 1
    %s18 = ssub.s32 %s10, %s17
    %p19 = scmp.eq.s32.totalorder %s18, 0
    %s21 = sadd.s32 %s20, 1
    %s22 = scalar_select %p19, %s20, %s21
    %p25 = pneg %p19
    %p26 = scmp.eq.s32.totalorder %s10, 1
    %p27 = por %p25, %p26
    %p28 = scmp.ne.s32.totalorder %s20, %s23
    %p29 = scmp.eq.s32.totalorder %s10, 0
    %p30 = por %p28, %p29
    %p31 = scmp.ne.s32.totalorder %s20, %s23
    %p32 = scmp.eq.s32.totalorder %s15, 1
    %p33 = por %p31, %p32
    %p34 = scmp.ne.s32.totalorder %s23, %s24
    %p35 = scmp.eq.s32.totalorder %s15, 0
    %p36 = por %p34, %p35
    %p37 = scmp.ne.s32.totalorder %s23, %s24
    %p38 = scmp.eq.s32.totalorder %s16, 1
    %p39 = por %p37, %p38
    %p41 = scmp.ne.s32.totalorder %s24, %s40
    %p42 = scmp.eq.s32.totalorder %s16, 0
    %p43 = por %p41, %p42
    %s45 = sadd.s32 %s44, 1
    %p48 = scmp.eq.s32.totalorder %s10, 1
    %p49 = scmp.ne.s32.totalorder %s44, %s46
    %p50 = scmp.eq.s32.totalorder %s10, 0
    %p51 = por %p49, %p50
    %p52 = scmp.ne.s32.totalorder %s44, %s46
    %p53 = scmp.eq.s32.totalorder %s15, 1
    %p54 = por %p52, %p53
    %p55 = scmp.ne.s32.totalorder %s46, %s47
    %p56 = scmp.eq.s32.totalorder %s15, 0
    %p57 = por %p55, %p56
    %p58 = scmp.ne.s32.totalorder %s46, %s47
    %p59 = scmp.eq.s32.totalorder %s16, 1
    %p60 = por %p58, %p59
    %p62 = scmp.ne.s32.totalorder %s47, %s61
    %p63 = scmp.eq.s32.totalorder %s16, 0
    %p64 = por %p62, %p63
    %s66 = sadd.s32 %s65, 1
    %p69 = scmp.eq.s32.totalorder %s10, 1
    %p70 = scmp.ne.s32.totalorder %s65, %s67
    %p71 = scmp.eq.s32.totalorder %s10, 0
    %p72 = por %p70, %p71
    %p73 = scmp.ne.s32.totalorder %s65, %s67
    %p74 = scmp.eq.s32.totalorder %s15, 1
    %p75 = por %p73, %p74
    %p76 = scmp.ne.s32.totalorder %s67, %s68
    %p77 = scmp.eq.s32.totalorder %s15, 0
    %p78 = por %p76, %p77
    %p79 = scmp.ne.s32.totalorder %s67, %s68
    %p80 = scmp.eq.s32.totalorder %s16, 1
    %p81 = por %p79, %p80
    %p83 = scmp.ne.s32.totalorder %s68, %s82
    %p84 = scmp.eq.s32.totalorder %s16, 0
    %p85 = por %p83, %p84
    %s87 = sadd.s32 %s86, 1
    %p90 = scmp.eq.s32.totalorder %s10, 1
    %p91 = scmp.ne.s32.totalorder %s86, %s88
    %p92 = scmp.eq.s32.totalorder %s10, 0
    %p93 = por %p91, %p92
    %p94 = scmp.ne.s32.totalorder %s86, %s88
    %p95 = scmp.eq.s32.totalorder %s15, 1
    %p96 = por %p94, %p95
    %p97 = scmp.ne.s32.totalorder %s88, %s89
    %p98 = scmp.eq.s32.totalorder %s15, 0
    %p99 = por %p97, %p98
    %p100 = scmp.ne.s32.totalorder %s88, %s89
    %p101 = scmp.eq.s32.totalorder %s16, 1
    %p102 = por %p100, %p101
    %p104 = scmp.ne.s32.totalorder %s89, %s103
    %p105 = scmp.eq.s32.totalorder %s16, 0
    %p106 = por %p104, %p105
    %s107 = ssub.s32 %s10, %s17
    %p108 = scmp.eq.s32.totalorder %s107, 0
    %s110 = sadd.s32 %s109, 1
    %s111 = scalar_select %p108, %s109, %s110
    %p114 = pneg %p108
    %p115 = scmp.eq.s32.totalorder %s10, 1
    %p116 = por %p114, %p115
    %p117 = scmp.ne.s32.totalorder %s109, %s112
    %p118 = scmp.eq.s32.totalorder %s10, 0
    %p119 = por %p117, %p118
    %p120 = scmp.ne.s32.totalorder %s109, %s112
    %p121 = scmp.eq.s32.totalorder %s15, 1
    %p122 = por %p120, %p121
    %p123 = scmp.ne.s32.totalorder %s112, %s113
    %p124 = scmp.eq.s32.totalorder %s15, 0
    %p125 = por %p123, %p124
    %p126 = scmp.ne.s32.totalorder %s112, %s113
    %p127 = scmp.eq.s32.totalorder %s16, 1
    %p128 = por %p126, %p127
    %p130 = scmp.ne.s32.totalorder %s113, %s129
    %p131 = scmp.eq.s32.totalorder %s16, 0
    %p132 = por %p130, %p131
    %p133 = scmp.le.s32.totalorder 1, %s10
    %p134 = scmp.lt.s32.totalorder %s10, 3
    %p135 = pnand %p133, %p134
    %p136 = pneg %p135
    // Predicated region
    $region9: #{basic_block_forward.3} parent=5 // pred_check
      _
    $region10: #{basic_block_forward.3} parent=5 // pred_check_branch
      %138 = sbr.rel (%p135) target = $region12
    $region11: #{basic_block_forward.3} parent=5 // pred_region
      %s139 = ssub.s32 %s10, 1
      // Predicated region
      $region13: #{basic_block_forward.3} parent=11 // pred_check
        %p140 = pneg %p57
      $region14: #{basic_block_forward.3} parent=11 // pred_check_branch
        %142 = sbr.rel (%p140) target = $region16
      $region15: #{basic_block_forward.3} parent=11 // pred_region
        _
      $region16: #{basic_block_forward.3} parent=11 // pred_fallthru
        _
      // Predicated region
      $region17: #{basic_block_forward.3} parent=11 // pred_check
        %p143 = pneg %p78
      $region18: #{basic_block_forward.3} parent=11 // pred_check_branch
        %145 = sbr.rel (%p143) target = $region20
      $region19: #{basic_block_forward.3} parent=11 // pred_region
        _
      $region20: #{basic_block_forward.3} parent=11 // pred_fallthru
        _
      // Predicated region
      $region21: #{basic_block_forward.3} parent=11 // pred_check
        %p146 = pneg %p99
      $region22: #{basic_block_forward.3} parent=11 // pred_check_branch
        %148 = sbr.rel (%p146) target = $region24
      $region23: #{basic_block_forward.3} parent=11 // pred_region
        _
      $region24: #{basic_block_forward.3} parent=11 // pred_fallthru
        _
    $region12: #{basic_block_forward.3} parent=5 // pred_fallthru
      _
    %p149 = scmp.lt.s32.totalorder %s10, 2
    // Predicated region
    $region25: #{basic_block_forward.3} parent=5 // pred_check
      %p150 = pneg %p149
    $region26: #{basic_block_forward.3} parent=5 // pred_check_branch
      %152 = sbr.rel (%p150) target = $region28
    $region27: #{basic_block_forward.3} parent=5 // pred_region
      // Predicated region
      $region29: #{basic_block_forward.3} parent=27 // pred_check
        %p153 = pneg %p30
      $region30: #{basic_block_forward.3} parent=27 // pred_check_branch
        %155 = sbr.rel (%p153) target = $region32
      $region31: #{basic_block_forward.3} parent=27 // pred_region
        %s156 = smul.u32 8, %s10
        %p157 = scmp.lt.s32.totalorder %s156, 15
        %s158 = scalar_select %p157, %s156, 15
        %s159 = smul.addr %s158, 4
        %s160 = scalar_lea.vmem %s0, %s159
        %s161 = smul.u32 8, %s10
      $region32: #{basic_block_forward.3} parent=27 // pred_fallthru
        _
    $region28: #{basic_block_forward.3} parent=5 // pred_fallthru
      _
    %p162 = scmp.le.s32.totalorder 1, %s10
    %p163 = scmp.lt.s32.totalorder %s10, 3
    %p164 = pnand %p162, %p163
    %p165 = pneg %p164
    // Predicated region
    $region33: #{basic_block_forward.3} parent=5 // pred_check
      _
    $region34: #{basic_block_forward.3} parent=5 // pred_check_branch
      %167 = sbr.rel (%p164) target = $region36
    $region35: #{basic_block_forward.3} parent=5 // pred_region
      %s168 = ssub.s32 %s10, 1
      %s169 = smul.u32 8, %s15
      %p170 = scmp.lt.s32.totalorder %s169, 15
      %s171 = scalar_select %p170, %s169, 15
      %s172 = smul.addr %s171, 4
      %s173 = scalar_lea.vmem %s0, %s172
      %p174 = pneg %p36
      %p175 = pneg %p33
      %p176 = pneg %p57
      %p177 = pneg %p54
      %p178 = pneg %p78
      %p179 = pneg %p75
      %p180 = pneg %p99
      %p181 = pneg %p96
      %p182 = pneg %p125
      %p183 = pneg %p122
      %s184 = smul.u32 8, %s15
      %p185 = scmp.lt.s32.totalorder %s184, 15
      %s186 = scalar_select %p185, %s184, 15
      %s187 = smul.addr %s186, 4
      %s188 = scalar_lea.vmem %s4, %s187
      %s189 = smul.u32 8, %s15
      %p190 = scmp.lt.s32.totalorder %s189, 15
      %s191 = scalar_select %p190, %s189, 15
      %s192 = smul.addr %s191, 4
      %s193 = scalar_lea.vmem %s0, %s192
      %s194 = smul.u32 8, %s15
      %s195 = smul.u32 8, %s15
      %p196 = scmp.lt.s32.totalorder %s195, 15
      %s197 = scalar_select %p196, %s195, 15
      %s198 = smul.addr %s197, 4
      %s199 = scalar_lea.vmem %s4, %s198
      %s200 = smul.u32 8, %s15
      %v202 = vld [vmem:[%s193] sm:$0xf]
      %v203 = vld [vmem:[%s193 + $0x4] sm:$0xf]
      %v204 = vld [vmem:[%s193 + $0x8] sm:$0xf]
      %v205 = vld [vmem:[%s193 + $0xc] sm:$0xf]
      %v206 = vld [vmem:[%s193 + $0x10] sm:$0xf]
      %v207 = vld [vmem:[%s193 + $0x14] sm:$0xf]
      %v208 = vld [vmem:[%s193 + $0x18] sm:$0xf]
      %v209 = vld [vmem:[%s193 + $0x1c] sm:$0xf]
      %v210 = vld [vmem:[%s1] sm:$0xf]
      %v211 = vld [vmem:[%s1 + $0x4] sm:$0xf]
      %v212 = vld [vmem:[%s1 + $0x8] sm:$0xf]
      %v213 = vld [vmem:[%s1 + $0xc] sm:$0xf]
      %v214 = vld [vmem:[%s1 + $0x10] sm:$0x3]
      %v223 = vunpack.c.l.b16 %v202
      %v224 = vunpack.c.l.b16 %v203
      %v225 = vunpack.c.l.b16 %v204
      %v226 = vunpack.c.l.b16 %v205
      %v227 = vunpack.c.l.b16 %v206
      %v228 = vunpack.c.l.b16 %v207
      %v229 = vunpack.c.l.b16 %v208
      %v230 = vunpack.c.l.b16 %v209
      %v231 = vpack.c.b16 %v224, %v223
      %v232 = vpack.c.b16 %v226, %v225
      %v233 = vpack.c.b16 %v228, %v227
      %v234 = vpack.c.b16 %v230, %v229
      %v240 = vunpack.c.l.b16 %v210
      %v241 = vunpack.c.l.b16 %v211
      %v242 = vunpack.c.l.b16 %v212
      %v243 = vunpack.c.l.b16 %v213
      %v244 = vunpack.c.l.b16 %v214
      %v245 = vpack.c.b16 %v241, %v240
      %v246 = vpack.c.b16 %v243, %v242
      %v247 = vpack.c.b16 %v244, %v244
      %vm250 = vcmask 293888
      %v252 = vsel %vm250, %v231, 0
      %v255 = vsel %vm250, %v232, 0
      %v258 = vsel %vm250, %v233, 0
      %v261 = vsel %vm250, %v234, 0
      %vm263 = vcmask 1041408
      %v265 = vsel %vm263, %v247, 0
      %267 = vmatpush.bf16.msra.mxu0 0
      %268 = vmatpush.bf16.msra.mxu0 0
      %269 = vmatpush.bf16.msra.mxu0 0
      %270 = vmatpush.bf16.msra.mxu0 0
      %271 = vmatpush.bf16.msra.mxu0 0
      %272 = vmatpush.bf16.msra.mxu0 %v265
      %273 = vmatpush.bf16.msra.mxu0 %v246
      %274 = vmatpush.bf16.msra.mxu0 %v245
      %275 = vmatmul.bf16.gmra.mxu0 %v252
      %v276 = vpop.f32.mrf.mxu0
      %v277 = vadd.f32 0.0, %v276
      %v278 = vpop.f32.mrf.mxu0
      %v279 = vadd.f32 0.0, %v278
      %280 = vmatmul.bf16.gmra.mxu0 %v255
      %v281 = vpop.f32.mrf.mxu0
      %v282 = vadd.f32 0.0, %v281
      %v283 = vpop.f32.mrf.mxu0
      %v284 = vadd.f32 0.0, %v283
      %285 = vmatmul.bf16.gmra.mxu0 %v258
      %v286 = vpop.f32.mrf.mxu0
      %v287 = vadd.f32 0.0, %v286
      %v288 = vpop.f32.mrf.mxu0
      %v289 = vadd.f32 0.0, %v288
      %290 = vmatmul.bf16.gmra.mxu0 %v261
      %v291 = vpop.f32.mrf.mxu0
      %v292 = vadd.f32 0.0, %v291
      %v293 = vpop.f32.mrf.mxu0
      %v294 = vadd.f32 0.0, %v293
      %295 = vdwg.mxu0
      %v296 = vld [vmem:[%s2] sm:$0x1]
      %v298 = vperm.slane %v296, 0
      %v300 = vmul.f32 %v277, %v298
      %v301 = vmul.f32 %v279, %v298
      %v302 = vmul.f32 %v282, %v298
      %v303 = vmul.f32 %v284, %v298
      %v304 = vmul.f32 %v287, %v298
      %v305 = vmul.f32 %v289, %v298
      %v306 = vmul.f32 %v292, %v298
      %v307 = vmul.f32 %v294, %v298
      %v308 = vld [vmem:[%s3] sm:$0x1]
      %v310 = vperm.slane %v308, 0
      %v312 = vadd.f32 %v300, %v310
      %v313 = vadd.f32 %v301, %v310
      %v314 = vadd.f32 %v302, %v310
      %v315 = vadd.f32 %v303, %v310
      %v316 = vadd.f32 %v304, %v310
      %v317 = vadd.f32 %v305, %v310
      %v318 = vadd.f32 %v306, %v310
      %v319 = vadd.f32 %v307, %v310
      %v320 = vmax.f32 %v312, 0.0
      %v321 = vmax.f32 %v313, 0.0
      %v322 = vmax.f32 %v314, 0.0
      %v323 = vmax.f32 %v315, 0.0
      %v324 = vmax.f32 %v316, 0.0
      %v325 = vmax.f32 %v317, 0.0
      %v326 = vmax.f32 %v318, 0.0
      %v327 = vmax.f32 %v319, 0.0
      %v328 = vpack.c.bf16 %v320, %v320
      %v329 = vpack.c.bf16 %v321, %v321
      %v330 = vpack.c.bf16 %v322, %v322
      %v331 = vpack.c.bf16 %v323, %v323
      %v332 = vpack.c.bf16 %v324, %v324
      %v333 = vpack.c.bf16 %v325, %v325
      %v334 = vpack.c.bf16 %v326, %v326
      %v335 = vpack.c.bf16 %v327, %v327
      %336 = vst [vmem:[%s199] sm:$0xf] %v328
      %337 = vst [vmem:[%s199 + $0x4] sm:$0xf] %v329
      %338 = vst [vmem:[%s199 + $0x8] sm:$0xf] %v330
      %339 = vst [vmem:[%s199 + $0xc] sm:$0xf] %v331
      %340 = vst [vmem:[%s199 + $0x10] sm:$0xf] %v332
      %341 = vst [vmem:[%s199 + $0x14] sm:$0xf] %v333
      %342 = vst [vmem:[%s199 + $0x18] sm:$0xf] %v334
      %343 = vst [vmem:[%s199 + $0x1c] sm:$0xf] %v335
      %s344 = smul.u32 8, %s15
      %p345 = scmp.lt.s32.totalorder %s344, 15
      %s346 = scalar_select %p345, %s344, 15
      %s347 = smul.addr %s346, 4
      %s348 = scalar_lea.vmem %s4, %s347
      // Predicated region
      $region37: #{basic_block_forward.3} parent=35 // pred_check
        %p349 = pneg %p122
      $region38: #{basic_block_forward.3} parent=35 // pred_check_branch
        %351 = sbr.rel (%p349) target = $region40
      $region39: #{basic_block_forward.3} parent=35 // pred_region
        %s352 = smul.u32 8, %s15
      $region40: #{basic_block_forward.3} parent=35 // pred_fallthru
        _
    $region36: #{basic_block_forward.3} parent=5 // pred_fallthru
      _
    %p353 = scmp.le.s32.totalorder 2, %s10
    // Predicated region
    $region41: #{basic_block_forward.3} parent=5 // pred_check
      %p354 = pneg %p353
    $region42: #{basic_block_forward.3} parent=5 // pred_check_branch
      %356 = sbr.rel (%p354) target = $region44
    $region43: #{basic_block_forward.3} parent=5 // pred_region
      %s357 = ssub.s32 %s10, 2
      // Predicated region
      $region45: #{basic_block_forward.3} parent=43 // pred_check
        %p358 = pneg %p128
      $region46: #{basic_block_forward.3} parent=43 // pred_check_branch
        %360 = sbr.rel (%p358) target = $region48
      $region47: #{basic_block_forward.3} parent=43 // pred_region
        %s361 = smul.u32 8, %s16
        %p362 = scmp.lt.s32.totalorder %s361, 15
        %s363 = scalar_select %p362, %s361, 15
        %s364 = smul.addr %s363, 4
        %s365 = scalar_lea.vmem %s4, %s364
      $region48: #{basic_block_forward.3} parent=43 // pred_fallthru
        _
    $region44: #{basic_block_forward.3} parent=5 // pred_fallthru
      _
  $region6: #{basic_block_forward.3} parent=0 // loop_footer
    %s14 = sadd.s32 1, %s10
  $region7: #{basic_block_forward.3} parent=0 // loop_footer_branch
    %9 = sbr.rel target = $region3
  $region8: #{basic_block_forward.3} parent=0 // loop_exit
    _

// kernel: basic_block_forward.4
$region0: #{basic_block_forward.4}
  #allocation0 [shape = 'u32[]', space=smem, size = 0x4, offset = 0x4, fixed_abs, tag = 'smem constant byte address 0x4 - core index']
  #allocation1 [shape = 'u32[72,128]{1,0:T(1,128)}', space=vmem, size = 0x9000, scoped, tag = 'internal scratch']
  %s0 = inlined_call_operand.vmem [shape: bf16[128,4], index: 0, kind: input, shape index: {}]
  %s1 = inlined_call_operand.vmem [shape: bf16[4,128], index: 1, kind: input, shape index: {}]
  %s2 = inlined_call_operand.vmem [shape: f32[1,128], index: 2, kind: input, shape index: {}]
  %s3 = inlined_call_operand.vmem [shape: f32[1,128], index: 3, kind: input, shape index: {}]
  %s4 = inlined_call_operand.vmem [shape: bf16[128,128], index: 4, kind: output, shape index: {}]
  %s5 = sld [smem:[#allocation0]]
  $region49: #{basic_block_forward.4} parent=0
    _
  %s7 = ssub.s32 1, %s5
  %s8 = scalar_select 0, %s7, %s5
  loop: start=0, step=1, limit=4
  $region2: #{basic_block_forward.4} parent=0 // loop_pre_header
    _
  $region3: #{basic_block_forward.4} parent=0 // loop_header
    %s10 = sphi 0, %s14
    %p11 = scmp.ge.s32.totalorder %s10, 4
    %s20 = sphi 0, %s22
    %s23 = sphi 0, %s20
    %s24 = sphi 0, %s23
    %s40 = sphi 0, %s24
    %s44 = sphi 0, %s44
    %s46 = sphi 0, %s44
    %s47 = sphi 0, %s46
    %s61 = sphi 0, %s47
    %s65 = sphi 0, %s65
    %s67 = sphi 0, %s65
    %s68 = sphi 0, %s67
    %s82 = sphi 0, %s68
    %s86 = sphi 0, %s86
    %s88 = sphi 0, %s86
    %s89 = sphi 0, %s88
    %s103 = sphi 0, %s89
    %s109 = sphi 0, %s111
    %s112 = sphi 0, %s109
    %s113 = sphi 0, %s112
    %s129 = sphi 0, %s113
  $region4: #{basic_block_forward.4} parent=0 // loop_header_branch
    %13 = sbr.rel (%p11) target = $region8
  $region5: #{basic_block_forward.4} parent=0 // loop_body
    %s15 = ssub.s32 %s10, 1
    %s16 = ssub.s32 %s10, 2
    %s17 = sadd.s32 %s10, 1
    %s18 = ssub.s32 %s10, %s17
    %p19 = scmp.eq.s32.totalorder %s18, 0
    %s21 = sadd.s32 %s20, 1
    %s22 = scalar_select %p19, %s20, %s21
    %p25 = pneg %p19
    %p26 = scmp.eq.s32.totalorder %s10, 1
    %p27 = por %p25, %p26
    %p28 = scmp.ne.s32.totalorder %s20, %s23
    %p29 = scmp.eq.s32.totalorder %s10, 0
    %p30 = por %p28, %p29
    %p31 = scmp.ne.s32.totalorder %s20, %s23
    %p32 = scmp.eq.s32.totalorder %s15, 1
    %p33 = por %p31, %p32
    %p34 = scmp.ne.s32.totalorder %s23, %s24
    %p35 = scmp.eq.s32.totalorder %s15, 0
    %p36 = por %p34, %p35
    %p37 = scmp.ne.s32.totalorder %s23, %s24
    %p38 = scmp.eq.s32.totalorder %s16, 1
    %p39 = por %p37, %p38
    %p41 = scmp.ne.s32.totalorder %s24, %s40
    %p42 = scmp.eq.s32.totalorder %s16, 0
    %p43 = por %p41, %p42
    %s45 = sadd.s32 %s44, 1
    %p48 = scmp.eq.s32.totalorder %s10, 1
    %p49 = scmp.ne.s32.totalorder %s44, %s46
    %p50 = scmp.eq.s32.totalorder %s10, 0
    %p51 = por %p49, %p50
    %p52 = scmp.ne.s32.totalorder %s44, %s46
    %p53 = scmp.eq.s32.totalorder %s15, 1
    %p54 = por %p52, %p53
    %p55 = scmp.ne.s32.totalorder %s46, %s47
    %p56 = scmp.eq.s32.totalorder %s15, 0
    %p57 = por %p55, %p56
    %p58 = scmp.ne.s32.totalorder %s46, %s47
    %p59 = scmp.eq.s32.totalorder %s16, 1
    %p60 = por %p58, %p59
    %p62 = scmp.ne.s32.totalorder %s47, %s61
    %p63 = scmp.eq.s32.totalorder %s16, 0
    %p64 = por %p62, %p63
    %s66 = sadd.s32 %s65, 1
    %p69 = scmp.eq.s32.totalorder %s10, 1
    %p70 = scmp.ne.s32.totalorder %s65, %s67
    %p71 = scmp.eq.s32.totalorder %s10, 0
    %p72 = por %p70, %p71
    %p73 = scmp.ne.s32.totalorder %s65, %s67
    %p74 = scmp.eq.s32.totalorder %s15, 1
    %p75 = por %p73, %p74
    %p76 = scmp.ne.s32.totalorder %s67, %s68
    %p77 = scmp.eq.s32.totalorder %s15, 0
    %p78 = por %p76, %p77
    %p79 = scmp.ne.s32.totalorder %s67, %s68
    %p80 = scmp.eq.s32.totalorder %s16, 1
    %p81 = por %p79, %p80
    %p83 = scmp.ne.s32.totalorder %s68, %s82
    %p84 = scmp.eq.s32.totalorder %s16, 0
    %p85 = por %p83, %p84
    %s87 = sadd.s32 %s86, 1
    %p90 = scmp.eq.s32.totalorder %s10, 1
    %p91 = scmp.ne.s32.totalorder %s86, %s88
    %p92 = scmp.eq.s32.totalorder %s10, 0
    %p93 = por %p91, %p92
    %p94 = scmp.ne.s32.totalorder %s86, %s88
    %p95 = scmp.eq.s32.totalorder %s15, 1
    %p96 = por %p94, %p95
    %p97 = scmp.ne.s32.totalorder %s88, %s89
    %p98 = scmp.eq.s32.totalorder %s15, 0
    %p99 = por %p97, %p98
    %p100 = scmp.ne.s32.totalorder %s88, %s89
    %p101 = scmp.eq.s32.totalorder %s16, 1
    %p102 = por %p100, %p101
    %p104 = scmp.ne.s32.totalorder %s89, %s103
    %p105 = scmp.eq.s32.totalorder %s16, 0
    %p106 = por %p104, %p105
    %s107 = ssub.s32 %s10, %s17
    %p108 = scmp.eq.s32.totalorder %s107, 0
    %s110 = sadd.s32 %s109, 1
    %s111 = scalar_select %p108, %s109, %s110
    %p114 = pneg %p108
    %p115 = scmp.eq.s32.totalorder %s10, 1
    %p116 = por %p114, %p115
    %p117 = scmp.ne.s32.totalorder %s109, %s112
    %p118 = scmp.eq.s32.totalorder %s10, 0
    %p119 = por %p117, %p118
    %p120 = scmp.ne.s32.totalorder %s109, %s112
    %p121 = scmp.eq.s32.totalorder %s15, 1
    %p122 = por %p120, %p121
    %p123 = scmp.ne.s32.totalorder %s112, %s113
    %p124 = scmp.eq.s32.totalorder %s15, 0
    %p125 = por %p123, %p124
    %p126 = scmp.ne.s32.totalorder %s112, %s113
    %p127 = scmp.eq.s32.totalorder %s16, 1
    %p128 = por %p126, %p127
    %p130 = scmp.ne.s32.totalorder %s113, %s129
    %p131 = scmp.eq.s32.totalorder %s16, 0
    %p132 = por %p130, %p131
    %p133 = scmp.le.s32.totalorder 1, %s10
    %p134 = scmp.lt.s32.totalorder %s10, 3
    %p135 = pnand %p133, %p134
    %p136 = pneg %p135
    // Predicated region
    $region9: #{basic_block_forward.4} parent=5 // pred_check
      _
    $region10: #{basic_block_forward.4} parent=5 // pred_check_branch
      %138 = sbr.rel (%p135) target = $region12
    $region11: #{basic_block_forward.4} parent=5 // pred_region
      %s139 = ssub.s32 %s10, 1
      // Predicated region
      $region13: #{basic_block_forward.4} parent=11 // pred_check
        %p140 = pneg %p57
      $region14: #{basic_block_forward.4} parent=11 // pred_check_branch
        %142 = sbr.rel (%p140) target = $region16
      $region15: #{basic_block_forward.4} parent=11 // pred_region
        _
      $region16: #{basic_block_forward.4} parent=11 // pred_fallthru
        _
      // Predicated region
      $region17: #{basic_block_forward.4} parent=11 // pred_check
        %p143 = pneg %p78
      $region18: #{basic_block_forward.4} parent=11 // pred_check_branch
        %145 = sbr.rel (%p143) target = $region20
      $region19: #{basic_block_forward.4} parent=11 // pred_region
        _
      $region20: #{basic_block_forward.4} parent=11 // pred_fallthru
        _
      // Predicated region
      $region21: #{basic_block_forward.4} parent=11 // pred_check
        %p146 = pneg %p99
      $region22: #{basic_block_forward.4} parent=11 // pred_check_branch
        %148 = sbr.rel (%p146) target = $region24
      $region23: #{basic_block_forward.4} parent=11 // pred_region
        _
      $region24: #{basic_block_forward.4} parent=11 // pred_fallthru
        _
    $region12: #{basic_block_forward.4} parent=5 // pred_fallthru
      _
    %p149 = scmp.lt.s32.totalorder %s10, 2
    // Predicated region
    $region25: #{basic_block_forward.4} parent=5 // pred_check
      %p150 = pneg %p149
    $region26: #{basic_block_forward.4} parent=5 // pred_check_branch
      %152 = sbr.rel (%p150) target = $region28
    $region27: #{basic_block_forward.4} parent=5 // pred_region
      // Predicated region
      $region29: #{basic_block_forward.4} parent=27 // pred_check
        %p153 = pneg %p30
      $region30: #{basic_block_forward.4} parent=27 // pred_check_branch
        %155 = sbr.rel (%p153) target = $region32
      $region31: #{basic_block_forward.4} parent=27 // pred_region
        %s156 = smul.u32 8, %s10
        %p157 = scmp.lt.s32.totalorder %s156, 15
        %s158 = scalar_select %p157, %s156, 15
        %s159 = smul.addr %s158, 4
        %s160 = scalar_lea.vmem %s0, %s159
        %s161 = smul.u32 8, %s10
      $region32: #{basic_block_forward.4} parent=27 // pred_fallthru
        _
    $region28: #{basic_block_forward.4} parent=5 // pred_fallthru
      _
    %p162 = scmp.le.s32.totalorder 1, %s10
    %p163 = scmp.lt.s32.totalorder %s10, 3
    %p164 = pnand %p162, %p163
    %p165 = pneg %p164
    // Predicated region
    $region33: #{basic_block_forward.4} parent=5 // pred_check
      _
    $region34: #{basic_block_forward.4} parent=5 // pred_check_branch
      %167 = sbr.rel (%p164) target = $region36
    $region35: #{basic_block_forward.4} parent=5 // pred_region
      %s168 = ssub.s32 %s10, 1
      %s169 = smul.u32 8, %s15
      %p170 = scmp.lt.s32.totalorder %s169, 15
      %s171 = scalar_select %p170, %s169, 15
      %s172 = smul.addr %s171, 4
      %s173 = scalar_lea.vmem %s0, %s172
      %p174 = pneg %p36
      %p175 = pneg %p33
      %p176 = pneg %p57
      %p177 = pneg %p54
      %p178 = pneg %p78
      %p179 = pneg %p75
      %p180 = pneg %p99
      %p181 = pneg %p96
      %p182 = pneg %p125
      %p183 = pneg %p122
      %s184 = smul.u32 8, %s15
      %p185 = scmp.lt.s32.totalorder %s184, 15
      %s186 = scalar_select %p185, %s184, 15
      %s187 = smul.addr %s186, 4
      %s188 = scalar_lea.vmem %s4, %s187
      %s189 = smul.u32 8, %s15
      %p190 = scmp.lt.s32.totalorder %s189, 15
      %s191 = scalar_select %p190, %s189, 15
      %s192 = smul.addr %s191, 4
      %s193 = scalar_lea.vmem %s0, %s192
      %s194 = smul.u32 8, %s15
      %s195 = smul.u32 8, %s15
      %p196 = scmp.lt.s32.totalorder %s195, 15
      %s197 = scalar_select %p196, %s195, 15
      %s198 = smul.addr %s197, 4
      %s199 = scalar_lea.vmem %s4, %s198
      %s200 = smul.u32 8, %s15
      %v202 = vld [vmem:[%s193] sm:$0xf]
      %v203 = vld [vmem:[%s193 + $0x4] sm:$0xf]
      %v204 = vld [vmem:[%s193 + $0x8] sm:$0xf]
      %v205 = vld [vmem:[%s193 + $0xc] sm:$0xf]
      %v206 = vld [vmem:[%s193 + $0x10] sm:$0xf]
      %v207 = vld [vmem:[%s193 + $0x14] sm:$0xf]
      %v208 = vld [vmem:[%s193 + $0x18] sm:$0xf]
      %v209 = vld [vmem:[%s193 + $0x1c] sm:$0xf]
      %v210 = vld [vmem:[%s1] sm:$0x3]
      %v219 = vunpack.c.l.b16 %v202
      %v220 = vunpack.c.l.b16 %v203
      %v221 = vunpack.c.l.b16 %v204
      %v222 = vunpack.c.l.b16 %v205
      %v223 = vunpack.c.l.b16 %v206
      %v224 = vunpack.c.l.b16 %v207
      %v225 = vunpack.c.l.b16 %v208
      %v226 = vunpack.c.l.b16 %v209
      %v227 = vpack.c.b16 %v220, %v219
      %v228 = vpack.c.b16 %v222, %v221
      %v229 = vpack.c.b16 %v224, %v223
      %v230 = vpack.c.b16 %v226, %v225
      %vm231 = vcmask 31744
      %v233 = vsel %vm231, %v227, 0
      %v236 = vsel %vm231, %v228, 0
      %v239 = vsel %vm231, %v229, 0
      %v242 = vsel %vm231, %v230, 0
      %vm244 = vcmask 1041408
      %v246 = vsel %vm244, %v210, 0
      %248 = vmatpush.bf16.msra.mxu0 0
      %249 = vmatpush.bf16.msra.mxu0 0
      %250 = vmatpush.bf16.msra.mxu0 0
      %251 = vmatpush.bf16.msra.mxu0 0
      %252 = vmatpush.bf16.msra.mxu0 0
      %253 = vmatpush.bf16.msra.mxu0 0
      %254 = vmatpush.bf16.msra.mxu0 0
      %255 = vmatpush.bf16.msra.mxu0 %v246
      %256 = vmatmul.bf16.gmra.mxu0 %v233
      %v257 = vpop.f32.mrf.mxu0
      %v258 = vadd.f32 0.0, %v257
      %v259 = vpop.f32.mrf.mxu0
      %v260 = vadd.f32 0.0, %v259
      %261 = vmatmul.bf16.gmra.mxu0 %v236
      %v262 = vpop.f32.mrf.mxu0
      %v263 = vadd.f32 0.0, %v262
      %v264 = vpop.f32.mrf.mxu0
      %v265 = vadd.f32 0.0, %v264
      %266 = vmatmul.bf16.gmra.mxu0 %v239
      %v267 = vpop.f32.mrf.mxu0
      %v268 = vadd.f32 0.0, %v267
      %v269 = vpop.f32.mrf.mxu0
      %v270 = vadd.f32 0.0, %v269
      %271 = vmatmul.bf16.gmra.mxu0 %v242
      %v272 = vpop.f32.mrf.mxu0
      %v273 = vadd.f32 0.0, %v272
      %v274 = vpop.f32.mrf.mxu0
      %v275 = vadd.f32 0.0, %v274
      %276 = vdwg.mxu0
      %v277 = vld [vmem:[%s2] sm:$0x1]
      %v279 = vperm.slane %v277, 0
      %v281 = vmul.f32 %v258, %v279
      %v282 = vmul.f32 %v260, %v279
      %v283 = vmul.f32 %v263, %v279
      %v284 = vmul.f32 %v265, %v279
      %v285 = vmul.f32 %v268, %v279
      %v286 = vmul.f32 %v270, %v279
      %v287 = vmul.f32 %v273, %v279
      %v288 = vmul.f32 %v275, %v279
      %v289 = vld [vmem:[%s3] sm:$0x1]
      %v291 = vperm.slane %v289, 0
      %v293 = vadd.f32 %v281, %v291
      %v294 = vadd.f32 %v282, %v291
      %v295 = vadd.f32 %v283, %v291
      %v296 = vadd.f32 %v284, %v291
      %v297 = vadd.f32 %v285, %v291
      %v298 = vadd.f32 %v286, %v291
      %v299 = vadd.f32 %v287, %v291
      %v300 = vadd.f32 %v288, %v291
      %v301 = vpack.c.bf16 %v293, %v293
      %v302 = vpack.c.bf16 %v294, %v294
      %v303 = vpack.c.bf16 %v295, %v295
      %v304 = vpack.c.bf16 %v296, %v296
      %v305 = vpack.c.bf16 %v297, %v297
      %v306 = vpack.c.bf16 %v298, %v298
      %v307 = vpack.c.bf16 %v299, %v299
      %v308 = vpack.c.bf16 %v300, %v300
      %309 = vst [vmem:[%s199] sm:$0xf] %v301
      %310 = vst [vmem:[%s199 + $0x4] sm:$0xf] %v302
      %311 = vst [vmem:[%s199 + $0x8] sm:$0xf] %v303
      %312 = vst [vmem:[%s199 + $0xc] sm:$0xf] %v304
      %313 = vst [vmem:[%s199 + $0x10] sm:$0xf] %v305
      %314 = vst [vmem:[%s199 + $0x14] sm:$0xf] %v306
      %315 = vst [vmem:[%s199 + $0x18] sm:$0xf] %v307
      %316 = vst [vmem:[%s199 + $0x1c] sm:$0xf] %v308
      %s317 = smul.u32 8, %s15
      %p318 = scmp.lt.s32.totalorder %s317, 15
      %s319 = scalar_select %p318, %s317, 15
      %s320 = smul.addr %s319, 4
      %s321 = scalar_lea.vmem %s4, %s320
      // Predicated region
      $region37: #{basic_block_forward.4} parent=35 // pred_check
        %p322 = pneg %p122
      $region38: #{basic_block_forward.4} parent=35 // pred_check_branch
        %324 = sbr.rel (%p322) target = $region40
      $region39: #{basic_block_forward.4} parent=35 // pred_region
        %s325 = smul.u32 8, %s15
      $region40: #{basic_block_forward.4} parent=35 // pred_fallthru
        _
    $region36: #{basic_block_forward.4} parent=5 // pred_fallthru
      _
    %p326 = scmp.le.s32.totalorder 2, %s10
    // Predicated region
    $region41: #{basic_block_forward.4} parent=5 // pred_check
      %p327 = pneg %p326
    $region42: #{basic_block_forward.4} parent=5 // pred_check_branch
      %329 = sbr.rel (%p327) target = $region44
    $region43: #{basic_block_forward.4} parent=5 // pred_region
      %s330 = ssub.s32 %s10, 2
      // Predicated region
      $region45: #{basic_block_forward.4} parent=43 // pred_check
        %p331 = pneg %p128
      $region46: #{basic_block_forward.4} parent=43 // pred_check_branch
        %333 = sbr.rel (%p331) target = $region48
      $region47: #{basic_block_forward.4} parent=43 // pred_region
        %s334 = smul.u32 8, %s16
        %p335 = scmp.lt.s32.totalorder %s334, 15
        %s336 = scalar_select %p335, %s334, 15
        %s337 = smul.addr %s336, 4
        %s338 = scalar_lea.vmem %s4, %s337
      $region48: #{basic_block_forward.4} parent=43 // pred_fallthru
        _
    $region44: #{basic_block_forward.4} parent=5 // pred_fallthru
      _
  $region6: #{basic_block_forward.4} parent=0 // loop_footer
    %s14 = sadd.s32 1, %s10
  $region7: #{basic_block_forward.4} parent=0 // loop_footer_branch
    %9 = sbr.rel target = $region3
  $region8: #{basic_block_forward.4} parent=0 // loop_exit
    _

// kernel: basic_block_forward.5
$region0: #{basic_block_forward.5}
  #allocation0 [shape = 'u32[]', space=smem, size = 0x4, offset = 0x4, fixed_abs, tag = 'smem constant byte address 0x4 - core index']
  #allocation1 [shape = 'u32[72,128]{1,0:T(1,128)}', space=vmem, size = 0x9000, scoped, tag = 'internal scratch']
  %s0 = inlined_call_operand.vmem [shape: bf16[2,102,128], index: 0, kind: input, shape index: {}]
  %s1 = inlined_call_operand.vmem [shape: bf16[9,128,128], index: 1, kind: input, shape index: {}]
  %s2 = inlined_call_operand.vmem [shape: f32[1,128], index: 2, kind: input, shape index: {}]
  %s3 = inlined_call_operand.vmem [shape: f32[1,128], index: 3, kind: input, shape index: {}]
  %s4 = inlined_call_operand.vmem [shape: bf16[2,80,128], index: 4, kind: input, shape index: {}]
  %s5 = inlined_call_operand.vmem [shape: f32[2,80,128], index: 5, kind: output, shape index: {}]
  %s6 = sld [smem:[#allocation0]]
  $region53: #{basic_block_forward.5} parent=0
    _
  %s8 = ssub.s32 1, %s6
  %s9 = scalar_select 0, %s8, %s6
  loop: start=0, step=1, limit=4
  $region2: #{basic_block_forward.5} parent=0 // loop_pre_header
    _
  $region3: #{basic_block_forward.5} parent=0 // loop_header
    %s11 = sphi 0, %s15
    %p12 = scmp.ge.s32.totalorder %s11, 4
    %s18 = sphi 0, %s30
    %s19 = sphi 0, %s26
    %s20 = sphi 0, %s18
    %s21 = sphi 0, %s19
    %s22 = sphi 0, %s20
    %s23 = sphi 0, %s21
    %s33 = sphi 0, %s35
    %s36 = sphi 0, %s33
    %s37 = sphi 0, %s36
    %s53 = sphi 0, %s37
    %s59 = sphi 0, %s61
    %s62 = sphi 0, %s59
    %s63 = sphi 0, %s62
    %s79 = sphi 0, %s63
    %s85 = sphi 0, %s87
    %s88 = sphi 0, %s85
    %s89 = sphi 0, %s88
    %s105 = sphi 0, %s89
    %s111 = sphi 0, %s113
    %s114 = sphi 0, %s111
    %s115 = sphi 0, %s114
    %s131 = sphi 0, %s115
    %s139 = sphi 0, %s141
    %s142 = sphi 0, %s139
    %s143 = sphi 0, %s142
    %s159 = sphi 0, %s143
    %s167 = sphi 0, %s169
    %s170 = sphi 0, %s167
    %s171 = sphi 0, %s170
    %s187 = sphi 0, %s171
  $region4: #{basic_block_forward.5} parent=0 // loop_header_branch
    %14 = sbr.rel (%p12) target = $region8
  $region5: #{basic_block_forward.5} parent=0 // loop_body
    %s16 = ssub.s32 %s11, 1
    %s17 = ssub.s32 %s11, 2
    %s24 = sadd.s32 1, %s19
    %p25 = scmp.ge.s32.totalorder %s24, 1
    %s26 = scalar_select %p25, 0, %s24
    %s27 = sadd.s32 1, %s18
    %s28 = scalar_select %p25, %s27, %s18
    %p29 = scmp.ge.s32.totalorder %s28, 2
    %s30 = scalar_select %p29, 0, %s28
    %s31 = ssub.s32 %s18, %s30
    %p32 = scmp.eq.s32.totalorder %s31, 0
    %s34 = sadd.s32 %s33, 1
    %s35 = scalar_select %p32, %s33, %s34
    %p38 = pneg %p32
    %p39 = scmp.eq.s32.totalorder %s11, 1
    %p40 = por %p38, %p39
    %p41 = scmp.ne.s32.totalorder %s33, %s36
    %p42 = scmp.eq.s32.totalorder %s11, 0
    %p43 = por %p41, %p42
    %p44 = scmp.ne.s32.totalorder %s33, %s36
    %p45 = scmp.eq.s32.totalorder %s16, 1
    %p46 = por %p44, %p45
    %p47 = scmp.ne.s32.totalorder %s36, %s37
    %p48 = scmp.eq.s32.totalorder %s16, 0
    %p49 = por %p47, %p48
    %p50 = scmp.ne.s32.totalorder %s36, %s37
    %p51 = scmp.eq.s32.totalorder %s17, 1
    %p52 = por %p50, %p51
    %p54 = scmp.ne.s32.totalorder %s37, %s53
    %p55 = scmp.eq.s32.totalorder %s17, 0
    %p56 = por %p54, %p55
    %s57 = ssub.s32 %s19, %s26
    %p58 = scmp.eq.s32.totalorder %s57, 0
    %s60 = sadd.s32 %s59, 1
    %s61 = scalar_select %p58, %s59, %s60
    %p64 = pneg %p58
    %p65 = scmp.eq.s32.totalorder %s11, 1
    %p66 = por %p64, %p65
    %p67 = scmp.ne.s32.totalorder %s59, %s62
    %p68 = scmp.eq.s32.totalorder %s11, 0
    %p69 = por %p67, %p68
    %p70 = scmp.ne.s32.totalorder %s59, %s62
    %p71 = scmp.eq.s32.totalorder %s16, 1
    %p72 = por %p70, %p71
    %p73 = scmp.ne.s32.totalorder %s62, %s63
    %p74 = scmp.eq.s32.totalorder %s16, 0
    %p75 = por %p73, %p74
    %p76 = scmp.ne.s32.totalorder %s62, %s63
    %p77 = scmp.eq.s32.totalorder %s17, 1
    %p78 = por %p76, %p77
    %p80 = scmp.ne.s32.totalorder %s63, %s79
    %p81 = scmp.eq.s32.totalorder %s17, 0
    %p82 = por %p80, %p81
    %s83 = ssub.s32 %s19, %s26
    %p84 = scmp.eq.s32.totalorder %s83, 0
    %s86 = sadd.s32 %s85, 1
    %s87 = scalar_select %p84, %s85, %s86
    %p90 = pneg %p84
    %p91 = scmp.eq.s32.totalorder %s11, 1
    %p92 = por %p90, %p91
    %p93 = scmp.ne.s32.totalorder %s85, %s88
    %p94 = scmp.eq.s32.totalorder %s11, 0
    %p95 = por %p93, %p94
    %p96 = scmp.ne.s32.totalorder %s85, %s88
    %p97 = scmp.eq.s32.totalorder %s16, 1
    %p98 = por %p96, %p97
    %p99 = scmp.ne.s32.totalorder %s88, %s89
    %p100 = scmp.eq.s32.totalorder %s16, 0
    %p101 = por %p99, %p100
    %p102 = scmp.ne.s32.totalorder %s88, %s89
    %p103 = scmp.eq.s32.totalorder %s17, 1
    %p104 = por %p102, %p103
    %p106 = scmp.ne.s32.totalorder %s89, %s105
    %p107 = scmp.eq.s32.totalorder %s17, 0
    %p108 = por %p106, %p107
    %s109 = ssub.s32 %s19, %s26
    %p110 = scmp.eq.s32.totalorder %s109, 0
    %s112 = sadd.s32 %s111, 1
    %s113 = scalar_select %p110, %s111, %s112
    %p116 = pneg %p110
    %p117 = scmp.eq.s32.totalorder %s11, 1
    %p118 = por %p116, %p117
    %p119 = scmp.ne.s32.totalorder %s111, %s114
    %p120 = scmp.eq.s32.totalorder %s11, 0
    %p121 = por %p119, %p120
    %p122 = scmp.ne.s32.totalorder %s111, %s114
    %p123 = scmp.eq.s32.totalorder %s16, 1
    %p124 = por %p122, %p123
    %p125 = scmp.ne.s32.totalorder %s114, %s115
    %p126 = scmp.eq.s32.totalorder %s16, 0
    %p127 = por %p125, %p126
    %p128 = scmp.ne.s32.totalorder %s114, %s115
    %p129 = scmp.eq.s32.totalorder %s17, 1
    %p130 = por %p128, %p129
    %p132 = scmp.ne.s32.totalorder %s115, %s131
    %p133 = scmp.eq.s32.totalorder %s17, 0
    %p134 = por %p132, %p133
    %s135 = ssub.s32 %s18, %s30
    %s136 = ssub.s32 %s19, %s26
    %s137 = sor.u32 %s135, %s136
    %p138 = scmp.eq.s32.totalorder %s137, 0
    %s140 = sadd.s32 %s139, 1
    %s141 = scalar_select %p138, %s139, %s140
    %p144 = pneg %p138
    %p145 = scmp.eq.s32.totalorder %s11, 1
    %p146 = por %p144, %p145
    %p147 = scmp.ne.s32.totalorder %s139, %s142
    %p148 = scmp.eq.s32.totalorder %s11, 0
    %p149 = por %p147, %p148
    %p150 = scmp.ne.s32.totalorder %s139, %s142
    %p151 = scmp.eq.s32.totalorder %s16, 1
    %p152 = por %p150, %p151
    %p153 = scmp.ne.s32.totalorder %s142, %s143
    %p154 = scmp.eq.s32.totalorder %s16, 0
    %p155 = por %p153, %p154
    %p156 = scmp.ne.s32.totalorder %s142, %s143
    %p157 = scmp.eq.s32.totalorder %s17, 1
    %p158 = por %p156, %p157
    %p160 = scmp.ne.s32.totalorder %s143, %s159
    %p161 = scmp.eq.s32.totalorder %s17, 0
    %p162 = por %p160, %p161
    %s163 = ssub.s32 %s18, %s30
    %s164 = ssub.s32 %s19, %s26
    %s165 = sor.u32 %s163, %s164
    %p166 = scmp.eq.s32.totalorder %s165, 0
    %s168 = sadd.s32 %s167, 1
    %s169 = scalar_select %p166, %s167, %s168
    %p172 = pneg %p166
    %p173 = scmp.eq.s32.totalorder %s11, 1
    %p174 = por %p172, %p173
    %p175 = scmp.ne.s32.totalorder %s167, %s170
    %p176 = scmp.eq.s32.totalorder %s11, 0
    %p177 = por %p175, %p176
    %p178 = scmp.ne.s32.totalorder %s167, %s170
    %p179 = scmp.eq.s32.totalorder %s16, 1
    %p180 = por %p178, %p179
    %p181 = scmp.ne.s32.totalorder %s170, %s171
    %p182 = scmp.eq.s32.totalorder %s16, 0
    %p183 = por %p181, %p182
    %p184 = scmp.ne.s32.totalorder %s170, %s171
    %p185 = scmp.eq.s32.totalorder %s17, 1
    %p186 = por %p184, %p185
    %p188 = scmp.ne.s32.totalorder %s171, %s187
    %p189 = scmp.eq.s32.totalorder %s17, 0
    %p190 = por %p188, %p189
    %p191 = scmp.le.s32.totalorder 1, %s11
    %p192 = scmp.lt.s32.totalorder %s11, 3
    %p193 = pnand %p191, %p192
    %p194 = pneg %p193
    // Predicated region
    $region9: #{basic_block_forward.5} parent=5 // pred_check
      _
    $region10: #{basic_block_forward.5} parent=5 // pred_check_branch
      %196 = sbr.rel (%p193) target = $region12
    $region11: #{basic_block_forward.5} parent=5 // pred_region
      %s197 = ssub.s32 %s11, 1
      // Predicated region
      $region13: #{basic_block_forward.5} parent=11 // pred_check
        %p198 = pneg %p75
      $region14: #{basic_block_forward.5} parent=11 // pred_check_branch
        %200 = sbr.rel (%p198) target = $region16
      $region15: #{basic_block_forward.5} parent=11 // pred_region
        %p201 = scmp.lt.s32.totalorder %s21, 0
        %s202 = scalar_select %p201, %s21, 0
        %s203 = smul.addr %s202, 4
        %s204 = scalar_lea.vmem %s1, %s203
      $region16: #{basic_block_forward.5} parent=11 // pred_fallthru
        _
      // Predicated region
      $region17: #{basic_block_forward.5} parent=11 // pred_check
        %p205 = pneg %p101
      $region18: #{basic_block_forward.5} parent=11 // pred_check_branch
        %207 = sbr.rel (%p205) target = $region20
      $region19: #{basic_block_forward.5} parent=11 // pred_region
        %p208 = scmp.lt.s32.totalorder %s21, 0
        %s209 = scalar_select %p208, %s21, 0
        %s210 = scalar_lea.vmem %s2, %s209
      $region20: #{basic_block_forward.5} parent=11 // pred_fallthru
        _
      // Predicated region
      $region21: #{basic_block_forward.5} parent=11 // pred_check
        %p211 = pneg %p127
      $region22: #{basic_block_forward.5} parent=11 // pred_check_branch
        %213 = sbr.rel (%p211) target = $region24
      $region23: #{basic_block_forward.5} parent=11 // pred_region
        %p214 = scmp.lt.s32.totalorder %s21, 0
        %s215 = scalar_select %p214, %s21, 0
        %s216 = scalar_lea.vmem %s3, %s215
      $region24: #{basic_block_forward.5} parent=11 // pred_fallthru
        _
    $region12: #{basic_block_forward.5} parent=5 // pred_fallthru
      _
    %p217 = scmp.lt.s32.totalorder %s11, 2
    // Predicated region
    $region25: #{basic_block_forward.5} parent=5 // pred_check
      %p218 = pneg %p217
    $region26: #{basic_block_forward.5} parent=5 // pred_check_branch
      %220 = sbr.rel (%p218) target = $region28
    $region27: #{basic_block_forward.5} parent=5 // pred_region
      // Predicated region
      $region29: #{basic_block_forward.5} parent=27 // pred_check
        %p221 = pneg %p43
      $region30: #{basic_block_forward.5} parent=27 // pred_check_branch
        %223 = sbr.rel (%p221) target = $region32
      $region31: #{basic_block_forward.5} parent=27 // pred_region
        %p224 = scmp.lt.s32.totalorder %s18, 1
        %s225 = scalar_select %p224, %s18, 1
        %s226 = smul.addr %s225, 13
        %s227 = smul.addr %s226, 4
        %s228 = scalar_lea.vmem %s0, %s227
      $region32: #{basic_block_forward.5} parent=27 // pred_fallthru
        _
      // Predicated region
      $region33: #{basic_block_forward.5} parent=27 // pred_check
        %p229 = pneg %p149
      $region34: #{basic_block_forward.5} parent=27 // pred_check_branch
        %231 = sbr.rel (%p229) target = $region36
      $region35: #{basic_block_forward.5} parent=27 // pred_region
        %p232 = scmp.lt.s32.totalorder %s18, 1
        %s233 = scalar_select %p232, %s18, 1
        %p234 = scmp.lt.s32.totalorder %s19, 0
        %s235 = scalar_select %p234, %s19, 0
        %s236 = smul.addr %s233, 10
        %s237 = sadd.s32 %s235, %s236
        %s238 = smul.addr %s237, 4
        %s239 = scalar_lea.vmem %s4, %s238
      $region36: #{basic_block_forward.5} parent=27 // pred_fallthru
        _
    $region28: #{basic_block_forward.5} parent=5 // pred_fallthru
      _
    %p240 = scmp.le.s32.totalorder 1, %s11
    %p241 = scmp.lt.s32.totalorder %s11, 3
    %p242 = pnand %p240, %p241
    %p243 = pneg %p242
    // Predicated region
    $region37: #{basic_block_forward.5} parent=5 // pred_check
      _
    $region38: #{basic_block_forward.5} parent=5 // pred_check_branch
      %245 = sbr.rel (%p242) target = $region40
    $region39: #{basic_block_forward.5} parent=5 // pred_region
      %s246 = ssub.s32 %s11, 1
      %p247 = scmp.lt.s32.totalorder %s20, 1
      %s248 = scalar_select %p247, %s20, 1
      %s249 = smul.addr %s248, 13
      %s250 = smul.addr %s249, 4
      %s251 = scalar_lea.vmem %s0, %s250
      %p252 = pneg %p49
      %p253 = pneg %p46
      %p254 = scmp.lt.s32.totalorder %s21, 0
      %s255 = scalar_select %p254, %s21, 0
      %s256 = smul.addr %s255, 4
      %s257 = scalar_lea.vmem %s1, %s256
      %p258 = pneg %p75
      %p259 = pneg %p72
      %p260 = scmp.lt.s32.totalorder %s21, 0
      %s261 = scalar_select %p260, %s21, 0
      %s262 = scalar_lea.vmem %s2, %s261
      %p263 = pneg %p101
      %p264 = pneg %p98
      %p265 = scmp.lt.s32.totalorder %s21, 0
      %s266 = scalar_select %p265, %s21, 0
      %s267 = scalar_lea.vmem %s3, %s266
      %p268 = pneg %p127
      %p269 = pneg %p124
      %p270 = scmp.lt.s32.totalorder %s20, 1
      %s271 = scalar_select %p270, %s20, 1
      %p272 = scmp.lt.s32.totalorder %s21, 0
      %s273 = scalar_select %p272, %s21, 0
      %s274 = smul.addr %s271, 10
      %s275 = sadd.s32 %s273, %s274
      %s276 = smul.addr %s275, 4
      %s277 = scalar_lea.vmem %s4, %s276
      %p278 = pneg %p155
      %p279 = pneg %p152
      %p280 = pneg %p183
      %p281 = pneg %p180
      %p282 = scmp.lt.s32.totalorder %s20, 1
      %s283 = scalar_select %p282, %s20, 1
      %p284 = scmp.lt.s32.totalorder %s21, 0
      %s285 = scalar_select %p284, %s21, 0
      %s286 = smul.addr %s283, 10
      %s287 = sadd.s32 %s285, %s286
      %s288 = smul.addr %s287, 8
      %s289 = scalar_lea.vmem %s5, %s288
      %p290 = scmp.lt.s32.totalorder %s20, 1
      %s291 = scalar_select %p290, %s20, 1
      %s292 = smul.addr %s291, 13
      %s293 = smul.addr %s292, 4
      %s294 = scalar_lea.vmem %s0, %s293
      %p295 = scmp.lt.s32.totalorder %s21, 0
      %s296 = scalar_select %p295, %s21, 0
      %s297 = smul.addr %s296, 4
      %s298 = scalar_lea.vmem %s1, %s297
      %p299 = scmp.lt.s32.totalorder %s21, 0
      %s300 = scalar_select %p299, %s21, 0
      %s301 = scalar_lea.vmem %s2, %s300
      %p302 = scmp.lt.s32.totalorder %s21, 0
      %s303 = scalar_select %p302, %s21, 0
      %s304 = scalar_lea.vmem %s3, %s303
      %p305 = scmp.lt.s32.totalorder %s20, 1
      %s306 = scalar_select %p305, %s20, 1
      %p307 = scmp.lt.s32.totalorder %s21, 0
      %s308 = scalar_select %p307, %s21, 0
      %s309 = smul.addr %s306, 10
      %s310 = sadd.s32 %s308, %s309
      %s311 = smul.addr %s310, 4
      %s312 = scalar_lea.vmem %s4, %s311
      %p313 = scmp.lt.s32.totalorder %s20, 1
      %s314 = scalar_select %p313, %s20, 1
      %p315 = scmp.lt.s32.totalorder %s21, 0
      %s316 = scalar_select %p315, %s21, 0
      %s317 = smul.addr %s314, 10
      %s318 = sadd.s32 %s316, %s317
      %s319 = smul.addr %s318, 8
      %s320 = scalar_lea.vmem %s5, %s319
      %v321 = vld [vmem:[%s294] sm:$0xf]
      %v322 = vld [vmem:[%s294 + $0x4] sm:$0xf]
      %v323 = vld [vmem:[%s294 + $0x8] sm:$0xf]
      %v324 = vld [vmem:[%s294 + $0xc] sm:$0xf]
      %v325 = vld [vmem:[%s294 + $0x10] sm:$0xf]
      %v326 = vld [vmem:[%s294 + $0x14] sm:$0xf]
      %v327 = vld [vmem:[%s294 + $0x18] sm:$0xf]
      %v328 = vld [vmem:[%s294 + $0x1c] sm:$0xf]
      %v329 = vld [vmem:[%s294 + $0x20] sm:$0xf]
      %v330 = vld [vmem:[%s294 + $0x24] sm:$0xf]
      %v331 = vld [vmem:[%s298] sm:$0xf]
      %v332 = vld [vmem:[%s298 + $0x4] sm:$0xf]
      %v333 = vld [vmem:[%s298 + $0x8] sm:$0xf]
      %v334 = vld [vmem:[%s298 + $0xc] sm:$0xf]
      %v335 = vld [vmem:[%s298 + $0x10] sm:$0xf]
      %v336 = vld [vmem:[%s298 + $0x14] sm:$0xf]
      %v337 = vld [vmem:[%s298 + $0x18] sm:$0xf]
      %v338 = vld [vmem:[%s298 + $0x1c] sm:$0xf]
      %v339 = vld [vmem:[%s298 + $0x20] sm:$0xf]
      %v340 = vld [vmem:[%s298 + $0x24] sm:$0xf]
      %v341 = vld [vmem:[%s298 + $0x28] sm:$0xf]
      %v342 = vld [vmem:[%s298 + $0x2c] sm:$0xf]
      %v343 = vld [vmem:[%s298 + $0x30] sm:$0xf]
      %v344 = vld [vmem:[%s298 + $0x34] sm:$0xf]
      %v345 = vld [vmem:[%s298 + $0x38] sm:$0xf]
      %v346 = vld [vmem:[%s298 + $0x3c] sm:$0xf]
      %v347 = vld [vmem:[%s294 + $0x28] sm:$0x1]
      %s348 = scalar_lea.vmem %s298, 64
      %v349 = vld [vmem:[%s348] sm:$0xf]
      %v350 = vld [vmem:[%s348 + $0x4] sm:$0xf]
      %v351 = vld [vmem:[%s348 + $0x8] sm:$0xf]
      %v352 = vld [vmem:[%s348 + $0xc] sm:$0xf]
      %v353 = vld [vmem:[%s348 + $0x10] sm:$0xf]
      %v354 = vld [vmem:[%s348 + $0x14] sm:$0xf]
      %v355 = vld [vmem:[%s348 + $0x18] sm:$0xf]
      %v356 = vld [vmem:[%s348 + $0x1c] sm:$0xf]
      %v357 = vld [vmem:[%s348 + $0x20] sm:$0xf]
      %v358 = vld [vmem:[%s348 + $0x24] sm:$0xf]
      %v359 = vld [vmem:[%s348 + $0x28] sm:$0xf]
      %v360 = vld [vmem:[%s348 + $0x2c] sm:$0xf]
      %v361 = vld [vmem:[%s348 + $0x30] sm:$0xf]
      %v362 = vld [vmem:[%s348 + $0x34] sm:$0xf]
      %v363 = vld [vmem:[%s348 + $0x38] sm:$0xf]
      %v364 = vld [vmem:[%s348 + $0x3c] sm:$0xf]
      %v376 = vunpack.c.l.b16 %v321
      %v377 = vunpack.c.l.b16 %v322
      %v378 = vunpack.c.l.b16 %v323
      %v379 = vunpack.c.l.b16 %v324
      %v380 = vunpack.c.l.b16 %v325
      %v381 = vunpack.c.l.b16 %v326
      %v382 = vunpack.c.l.b16 %v327
      %v383 = vunpack.c.l.b16 %v328
      %v384 = vunpack.c.l.b16 %v329
      %v385 = vunpack.c.l.b16 %v330
      %v386 = vunpack.c.l.b16 %v347
      %v387 = vpack.c.b16 %v377, %v376
      %v388 = vpack.c.b16 %v379, %v378
      %v389 = vpack.c.b16 %v381, %v380
      %v390 = vpack.c.b16 %v383, %v382
      %v391 = vpack.c.b16 %v385, %v384
      %v392 = vpack.c.b16 %v386, %v386
      %vm393 = vsmask.f32 7424
      %v395 = vshrl.u32 %v387, 16
      %v397 = vshll.u32 %v387, 16
      %v399 = vrot.slane %v397, 1
      %v400 = vor.u32 %v395, %v399
      %v402 = vshll.u32 %v388, 16
      %v404 = vrot.slane %v402, 1
      %v405 = vsel %vm393, %v400, %v404
      %v406 = vshrl.u32 %v388, 16
      %v408 = vor.u32 %v406, %v404
      %v410 = vshll.u32 %v389, 16
      %v412 = vrot.slane %v410, 1
      %v413 = vsel %vm393, %v408, %v412
      %v414 = vshrl.u32 %v389, 16
      %v416 = vor.u32 %v414, %v412
      %v418 = vshll.u32 %v390, 16
      %v420 = vrot.slane %v418, 1
      %v421 = vsel %vm393, %v416, %v420
      %v422 = vshrl.u32 %v390, 16
      %v424 = vor.u32 %v422, %v420
      %v426 = vshll.u32 %v391, 16
      %v428 = vrot.slane %v426, 1
      %v429 = vsel %vm393, %v424, %v428
      %v430 = vshrl.u32 %v391, 16
      %v432 = vor.u32 %v430, %v428
      %v434 = vshll.u32 %v392, 16
      %v436 = vrot.slane %v434, 1
      %v437 = vsel %vm393, %v432, %v436
      %v459 = vunpack.c.l.b16 %v349
      %v460 = vunpack.c.l.b16 %v350
      %v461 = vunpack.c.l.b16 %v351
      %v462 = vunpack.c.l.b16 %v352
      %v463 = vunpack.c.l.b16 %v353
      %v464 = vunpack.c.l.b16 %v354
      %v465 = vunpack.c.l.b16 %v355
      %v466 = vunpack.c.l.b16 %v356
      %v467 = vunpack.c.l.b16 %v357
      %v468 = vunpack.c.l.b16 %v358
      %v469 = vunpack.c.l.b16 %v359
      %v470 = vunpack.c.l.b16 %v360
      %v471 = vunpack.c.l.b16 %v361
      %v472 = vunpack.c.l.b16 %v362
      %v473 = vunpack.c.l.b16 %v363
      %v474 = vunpack.c.l.b16 %v364
      %v475 = vpack.c.b16 %v460, %v459
      %v476 = vpack.c.b16 %v462, %v461
      %v477 = vpack.c.b16 %v464, %v463
      %v478 = vpack.c.b16 %v466, %v465
      %v479 = vpack.c.b16 %v468, %v467
      %v480 = vpack.c.b16 %v470, %v469
      %v481 = vpack.c.b16 %v472, %v471
      %v482 = vpack.c.b16 %v474, %v473
      %491 = vmatpush.bf16.msra.mxu0 %v482
      %492 = vmatpush.bf16.msra.mxu0 %v481
      %493 = vmatpush.bf16.msra.mxu0 %v480
      %494 = vmatpush.bf16.msra.mxu0 %v479
      %495 = vmatpush.bf16.msra.mxu0 %v478
      %496 = vmatpush.bf16.msra.mxu0 %v477
      %497 = vmatpush.bf16.msra.mxu0 %v476
      %498 = vmatpush.bf16.msra.mxu0 %v475
      %499 = vmatmul.bf16.gmra.mxu0 %v405
      %v500 = vpop.f32.mrf.mxu0
      %v501 = vadd.f32 0.0, %v500
      %v502 = vpop.f32.mrf.mxu0
      %v503 = vadd.f32 0.0, %v502
      %504 = vmatmul.bf16.gmra.mxu0 %v413
      %v505 = vpop.f32.mrf.mxu0
      %v506 = vadd.f32 0.0, %v505
      %v507 = vpop.f32.mrf.mxu0
      %v508 = vadd.f32 0.0, %v507
      %509 = vmatmul.bf16.gmra.mxu0 %v421
      %v510 = vpop.f32.mrf.mxu0
      %v511 = vadd.f32 0.0, %v510
      %v512 = vpop.f32.mrf.mxu0
      %v513 = vadd.f32 0.0, %v512
      %514 = vmatmul.bf16.gmra.mxu0 %v429
      %v515 = vpop.f32.mrf.mxu0
      %v516 = vadd.f32 0.0, %v515
      %v517 = vpop.f32.mrf.mxu0
      %v518 = vadd.f32 0.0, %v517
      %519 = vmatmul.bf16.gmra.mxu0 %v437
      %v520 = vpop.f32.mrf.mxu0
      %v521 = vadd.f32 0.0, %v520
      %v522 = vpop.f32.mrf.mxu0
      %v523 = vadd.f32 0.0, %v522
      %524 = vdwg.mxu0
      %v546 = vunpack.c.l.b16 %v331
      %v547 = vunpack.c.l.b16 %v332
      %v548 = vunpack.c.l.b16 %v333
      %v549 = vunpack.c.l.b16 %v334
      %v550 = vunpack.c.l.b16 %v335
      %v551 = vunpack.c.l.b16 %v336
      %v552 = vunpack.c.l.b16 %v337
      %v553 = vunpack.c.l.b16 %v338
      %v554 = vunpack.c.l.b16 %v339
      %v555 = vunpack.c.l.b16 %v340
      %v556 = vunpack.c.l.b16 %v341
      %v557 = vunpack.c.l.b16 %v342
      %v558 = vunpack.c.l.b16 %v343
      %v559 = vunpack.c.l.b16 %v344
      %v560 = vunpack.c.l.b16 %v345
      %v561 = vunpack.c.l.b16 %v346
      %v562 = vpack.c.b16 %v547, %v546
      %v563 = vpack.c.b16 %v549, %v548
      %v564 = vpack.c.b16 %v551, %v550
      %v565 = vpack.c.b16 %v553, %v552
      %v566 = vpack.c.b16 %v555, %v554
      %v567 = vpack.c.b16 %v557, %v556
      %v568 = vpack.c.b16 %v559, %v558
      %v569 = vpack.c.b16 %v561, %v560
      %578 = vmatpush.bf16.msra.mxu0 %v569
      %579 = vmatpush.bf16.msra.mxu0 %v568
      %580 = vmatpush.bf16.msra.mxu0 %v567
      %581 = vmatpush.bf16.msra.mxu0 %v566
      %582 = vmatpush.bf16.msra.mxu0 %v565
      %583 = vmatpush.bf16.msra.mxu0 %v564
      %584 = vmatpush.bf16.msra.mxu0 %v563
      %585 = vmatpush.bf16.msra.mxu0 %v562
      %586 = vmatmul.bf16.gmra.mxu0 %v387
      %v587 = vpop.f32.mrf.mxu0
      %v588 = vadd.f32 %v501, %v587
      %v589 = vpop.f32.mrf.mxu0
      %v590 = vadd.f32 %v503, %v589
      %591 = vmatmul.bf16.gmra.mxu0 %v388
      %v592 = vpop.f32.mrf.mxu0
      %v593 = vadd.f32 %v506, %v592
      %v594 = vpop.f32.mrf.mxu0
      %v595 = vadd.f32 %v508, %v594
      %596 = vmatmul.bf16.gmra.mxu0 %v389
      %v597 = vpop.f32.mrf.mxu0
      %v598 = vadd.f32 %v511, %v597
      %v599 = vpop.f32.mrf.mxu0
      %v600 = vadd.f32 %v513, %v599
      %601 = vmatmul.bf16.gmra.mxu0 %v390
      %v602 = vpop.f32.mrf.mxu0
      %v603 = vadd.f32 %v516, %v602
      %v604 = vpop.f32.mrf.mxu0
      %v605 = vadd.f32 %v518, %v604
      %606 = vmatmul.bf16.gmra.mxu0 %v391
      %v607 = vpop.f32.mrf.mxu0
      %v608 = vadd.f32 %v521, %v607
      %v609 = vpop.f32.mrf.mxu0
      %v610 = vadd.f32 %v523, %v609
      %611 = vdwg.mxu0
      %v612 = vld [vmem:[%s294] sm:$0xe]
      %s613 = scalar_lea.vmem %s298, 128
      %v614 = vld [vmem:[%s613] sm:$0xf]
      %v615 = vld [vmem:[%s613 + $0x4] sm:$0xf]
      %v616 = vld [vmem:[%s613 + $0x8] sm:$0xf]
      %v617 = vld [vmem:[%s613 + $0xc] sm:$0xf]
      %v618 = vld [vmem:[%s613 + $0x10] sm:$0xf]
      %v619 = vld [vmem:[%s613 + $0x14] sm:$0xf]
      %v620 = vld [vmem:[%s613 + $0x18] sm:$0xf]
      %v621 = vld [vmem:[%s613 + $0x1c] sm:$0xf]
      %v622 = vld [vmem:[%s613 + $0x20] sm:$0xf]
      %v623 = vld [vmem:[%s613 + $0x24] sm:$0xf]
      %v624 = vld [vmem:[%s613 + $0x28] sm:$0xf]
      %v625 = vld [vmem:[%s613 + $0x2c] sm:$0xf]
      %v626 = vld [vmem:[%s613 + $0x30] sm:$0xf]
      %v627 = vld [vmem:[%s613 + $0x34] sm:$0xf]
      %v628 = vld [vmem:[%s613 + $0x38] sm:$0xf]
      %v629 = vld [vmem:[%s613 + $0x3c] sm:$0xf]
      %v631 = vunpack.c.l.b16 %v612
      %v632 = vpack.c.b16 %v377, %v631
      %vm633 = vcmask 1046528
      %v634 = vrot.slane %v632, 1
      %v635 = vrot.slane %v388, 1
      %v636 = vsel %vm633, %v634, %v635
      %v637 = vrot.slane %v389, 1
      %v638 = vsel %vm633, %v635, %v637
      %v639 = vrot.slane %v390, 1
      %v640 = vsel %vm633, %v637, %v639
      %v641 = vrot.slane %v391, 1
      %v642 = vsel %vm633, %v639, %v641
      %v643 = vrot.slane %v392, 1
      %v644 = vsel %vm633, %v641, %v643
      %v666 = vunpack.c.l.b16 %v614
      %v667 = vunpack.c.l.b16 %v615
      %v668 = vunpack.c.l.b16 %v616
      %v669 = vunpack.c.l.b16 %v617
      %v670 = vunpack.c.l.b16 %v618
      %v671 = vunpack.c.l.b16 %v619
      %v672 = vunpack.c.l.b16 %v620
      %v673 = vunpack.c.l.b16 %v621
      %v674 = vunpack.c.l.b16 %v622
      %v675 = vunpack.c.l.b16 %v623
      %v676 = vunpack.c.l.b16 %v624
      %v677 = vunpack.c.l.b16 %v625
      %v678 = vunpack.c.l.b16 %v626
      %v679 = vunpack.c.l.b16 %v627
      %v680 = vunpack.c.l.b16 %v628
      %v681 = vunpack.c.l.b16 %v629
      %v682 = vpack.c.b16 %v667, %v666
      %v683 = vpack.c.b16 %v669, %v668
      %v684 = vpack.c.b16 %v671, %v670
      %v685 = vpack.c.b16 %v673, %v672
      %v686 = vpack.c.b16 %v675, %v674
      %v687 = vpack.c.b16 %v677, %v676
      %v688 = vpack.c.b16 %v679, %v678
      %v689 = vpack.c.b16 %v681, %v680
      %698 = vmatpush.bf16.msra.mxu0 %v689
      %699 = vmatpush.bf16.msra.mxu0 %v688
      %700 = vmatpush.bf16.msra.mxu0 %v687
      %701 = vmatpush.bf16.msra.mxu0 %v686
      %702 = vmatpush.bf16.msra.mxu0 %v685
      %703 = vmatpush.bf16.msra.mxu0 %v684
      %704 = vmatpush.bf16.msra.mxu0 %v683
      %705 = vmatpush.bf16.msra.mxu0 %v682
      %706 = vmatmul.bf16.gmra.mxu0 %v636
      %v707 = vpop.f32.mrf.mxu0
      %v708 = vadd.f32 0.0, %v707
      %v709 = vpop.f32.mrf.mxu0
      %v710 = vadd.f32 0.0, %v709
      %711 = vmatmul.bf16.gmra.mxu0 %v638
      %v712 = vpop.f32.mrf.mxu0
      %v713 = vadd.f32 0.0, %v712
      %v714 = vpop.f32.mrf.mxu0
      %v715 = vadd.f32 0.0, %v714
      %716 = vmatmul.bf16.gmra.mxu0 %v640
      %v717 = vpop.f32.mrf.mxu0
      %v718 = vadd.f32 0.0, %v717
      %v719 = vpop.f32.mrf.mxu0
      %v720 = vadd.f32 0.0, %v719
      %721 = vmatmul.bf16.gmra.mxu0 %v642
      %v722 = vpop.f32.mrf.mxu0
      %v723 = vadd.f32 0.0, %v722
      %v724 = vpop.f32.mrf.mxu0
      %v725 = vadd.f32 0.0, %v724
      %726 = vmatmul.bf16.gmra.mxu0 %v644
      %v727 = vpop.f32.mrf.mxu0
      %v728 = vadd.f32 0.0, %v727
      %v729 = vpop.f32.mrf.mxu0
      %v730 = vadd.f32 0.0, %v729
      %731 = vdwg.mxu0
      %v732 = vadd.f32 %v588, %v708
      %v733 = vadd.f32 %v590, %v710
      %v734 = vadd.f32 %v593, %v713
      %v735 = vadd.f32 %v595, %v715
      %v736 = vadd.f32 %v598, %v718
      %v737 = vadd.f32 %v600, %v720
      %v738 = vadd.f32 %v603, %v723
      %v739 = vadd.f32 %v605, %v725
      %v740 = vadd.f32 %v608, %v728
      %v741 = vadd.f32 %v610, %v730
      %v742 = vld [vmem:[%s294 + $0x4] sm:$0xe]
      %v743 = vld [vmem:[%s294 + $0x8] sm:$0xf]
      %v744 = vld [vmem:[%s294 + $0xc] sm:$0xf]
      %v745 = vld [vmem:[%s294 + $0x10] sm:$0xf]
      %v746 = vld [vmem:[%s294 + $0x14] sm:$0xf]
      %v747 = vld [vmem:[%s294 + $0x18] sm:$0xf]
      %v748 = vld [vmem:[%s294 + $0x1c] sm:$0xf]
      %v749 = vld [vmem:[%s294 + $0x20] sm:$0xf]
      %v750 = vld [vmem:[%s294 + $0x24] sm:$0xf]
      %v751 = vld [vmem:[%s294 + $0x28] sm:$0xf]
      %v752 = vld [vmem:[%s294 + $0x2c] sm:$0x1]
      %s753 = scalar_lea.vmem %s298, 192
      %v754 = vld [vmem:[%s753] sm:$0xf]
      %v755 = vld [vmem:[%s753 + $0x4] sm:$0xf]
      %v756 = vld [vmem:[%s753 + $0x8] sm:$0xf]
      %v757 = vld [vmem:[%s753 + $0xc] sm:$0xf]
      %v758 = vld [vmem:[%s753 + $0x10] sm:$0xf]
      %v759 = vld [vmem:[%s753 + $0x14] sm:$0xf]
      %v760 = vld [vmem:[%s753 + $0x18] sm:$0xf]
      %v761 = vld [vmem:[%s753 + $0x1c] sm:$0xf]
      %v762 = vld [vmem:[%s753 + $0x20] sm:$0xf]
      %v763 = vld [vmem:[%s753 + $0x24] sm:$0xf]
      %v764 = vld [vmem:[%s753 + $0x28] sm:$0xf]
      %v765 = vld [vmem:[%s753 + $0x2c] sm:$0xf]
      %v766 = vld [vmem:[%s753 + $0x30] sm:$0xf]
      %v767 = vld [vmem:[%s753 + $0x34] sm:$0xf]
      %v768 = vld [vmem:[%s753 + $0x38] sm:$0xf]
      %v769 = vld [vmem:[%s753 + $0x3c] sm:$0xf]
      %v781 = vunpack.c.l.b16 %v742
      %v782 = vunpack.c.l.b16 %v743
      %v783 = vunpack.c.l.b16 %v744
      %v784 = vunpack.c.l.b16 %v745
      %v785 = vunpack.c.l.b16 %v746
      %v786 = vunpack.c.l.b16 %v747
      %v787 = vunpack.c.l.b16 %v748
      %v788 = vunpack.c.l.b16 %v749
      %v789 = vunpack.c.l.b16 %v750
      %v790 = vunpack.c.l.b16 %v751
      %v791 = vunpack.c.l.b16 %v752
      %v792 = vpack.c.b16 %v782, %v781
      %v793 = vpack.c.b16 %v784, %v783
      %v794 = vpack.c.b16 %v786, %v785
      %v795 = vpack.c.b16 %v788, %v787
      %v796 = vpack.c.b16 %v790, %v789
      %v797 = vpack.c.b16 %v791, %v791
      %v798 = vrot.slane %v792, 1
      %v799 = vrot.slane %v793, 1
      %v800 = vsel %vm633, %v798, %v799
      %v801 = vrot.slane %v794, 1
      %v802 = vsel %vm633, %v799, %v801
      %v803 = vrot.slane %v795, 1
      %v804 = vsel %vm633, %v801, %v803
      %v805 = vrot.slane %v796, 1
      %v806 = vsel %vm633, %v803, %v805
      %v807 = vrot.slane %v797, 1
      %v808 = vsel %vm633, %v805, %v807
      %v830 = vunpack.c.l.b16 %v754
      %v831 = vunpack.c.l.b16 %v755
      %v832 = vunpack.c.l.b16 %v756
      %v833 = vunpack.c.l.b16 %v757
      %v834 = vunpack.c.l.b16 %v758
      %v835 = vunpack.c.l.b16 %v759
      %v836 = vunpack.c.l.b16 %v760
      %v837 = vunpack.c.l.b16 %v761
      %v838 = vunpack.c.l.b16 %v762
      %v839 = vunpack.c.l.b16 %v763
      %v840 = vunpack.c.l.b16 %v764
      %v841 = vunpack.c.l.b16 %v765
      %v842 = vunpack.c.l.b16 %v766
      %v843 = vunpack.c.l.b16 %v767
      %v844 = vunpack.c.l.b16 %v768
      %v845 = vunpack.c.l.b16 %v769
      %v846 = vpack.c.b16 %v831, %v830
      %v847 = vpack.c.b16 %v833, %v832
      %v848 = vpack.c.b16 %v835, %v834
      %v849 = vpack.c.b16 %v837, %v836
      %v850 = vpack.c.b16 %v839, %v838
      %v851 = vpack.c.b16 %v841, %v840
      %v852 = vpack.c.b16 %v843, %v842
      %v853 = vpack.c.b16 %v845, %v844
      %862 = vmatpush.bf16.msra.mxu0 %v853
      %863 = vmatpush.bf16.msra.mxu0 %v852
      %864 = vmatpush.bf16.msra.mxu0 %v851
      %865 = vmatpush.bf16.msra.mxu0 %v850
      %866 = vmatpush.bf16.msra.mxu0 %v849
      %867 = vmatpush.bf16.msra.mxu0 %v848
      %868 = vmatpush.bf16.msra.mxu0 %v847
      %869 = vmatpush.bf16.msra.mxu0 %v846
      %870 = vmatmul.bf16.gmra.mxu0 %v800
      %v871 = vpop.f32.mrf.mxu0
      %v872 = vadd.f32 0.0, %v871
      %v873 = vpop.f32.mrf.mxu0
      %v874 = vadd.f32 0.0, %v873
      %875 = vmatmul.bf16.gmra.mxu0 %v802
      %v876 = vpop.f32.mrf.mxu0
      %v877 = vadd.f32 0.0, %v876
      %v878 = vpop.f32.mrf.mxu0
      %v879 = vadd.f32 0.0, %v878
      %880 = vmatmul.bf16.gmra.mxu0 %v804
      %v881 = vpop.f32.mrf.mxu0
      %v882 = vadd.f32 0.0, %v881
      %v883 = vpop.f32.mrf.mxu0
      %v884 = vadd.f32 0.0, %v883
      %885 = vmatmul.bf16.gmra.mxu0 %v806
      %v886 = vpop.f32.mrf.mxu0
      %v887 = vadd.f32 0.0, %v886
      %v888 = vpop.f32.mrf.mxu0
      %v889 = vadd.f32 0.0, %v888
      %890 = vmatmul.bf16.gmra.mxu0 %v808
      %v891 = vpop.f32.mrf.mxu0
      %v892 = vadd.f32 0.0, %v891
      %v893 = vpop.f32.mrf.mxu0
      %v894 = vadd.f32 0.0, %v893
      %895 = vdwg.mxu0
      %v896 = vadd.f32 %v732, %v872
      %v897 = vadd.f32 %v733, %v874
      %v898 = vadd.f32 %v734, %v877
      %v899 = vadd.f32 %v735, %v879
      %v900 = vadd.f32 %v736, %v882
      %v901 = vadd.f32 %v737, %v884
      %v902 = vadd.f32 %v738, %v887
      %v903 = vadd.f32 %v739, %v889
      %v904 = vadd.f32 %v740, %v892
      %v905 = vadd.f32 %v741, %v894
      %v906 = vld [vmem:[%s294 + $0x2c] sm:$0x3]
      %s907 = scalar_lea.vmem %s298, 256
      %v908 = vld [vmem:[%s907] sm:$0xf]
      %v909 = vld [vmem:[%s907 + $0x4] sm:$0xf]
      %v910 = vld [vmem:[%s907 + $0x8] sm:$0xf]
      %v911 = vld [vmem:[%s907 + $0xc] sm:$0xf]
      %v912 = vld [vmem:[%s907 + $0x10] sm:$0xf]
      %v913 = vld [vmem:[%s907 + $0x14] sm:$0xf]
      %v914 = vld [vmem:[%s907 + $0x18] sm:$0xf]
      %v915 = vld [vmem:[%s907 + $0x1c] sm:$0xf]
      %v916 = vld [vmem:[%s907 + $0x20] sm:$0xf]
      %v917 = vld [vmem:[%s907 + $0x24] sm:$0xf]
      %v918 = vld [vmem:[%s907 + $0x28] sm:$0xf]
      %v919 = vld [vmem:[%s907 + $0x2c] sm:$0xf]
      %v920 = vld [vmem:[%s907 + $0x30] sm:$0xf]
      %v921 = vld [vmem:[%s907 + $0x34] sm:$0xf]
      %v922 = vld [vmem:[%s907 + $0x38] sm:$0xf]
      %v923 = vld [vmem:[%s907 + $0x3c] sm:$0xf]
      %v925 = vunpack.c.l.b16 %v906
      %v926 = vpack.c.b16 %v925, %v925
      %vm927 = vsmask.f32 6400
      %v929 = vshrl.u32 %v792, 16
      %v931 = vrot.slane %v929, 1
      %v932 = vshll.u32 %v792, 16
      %v934 = vrot.slane %v932, 2
      %v935 = vor.u32 %v931, %v934
      %v937 = vshrl.u32 %v793, 16
      %v939 = vrot.slane %v937, 1
      %v940 = vshll.u32 %v793, 16
      %v942 = vrot.slane %v940, 2
      %v943 = vor.u32 %v939, %v942
      %v944 = vsel %vm927, %v935, %v943
      %v946 = vshrl.u32 %v794, 16
      %v948 = vrot.slane %v946, 1
      %v949 = vshll.u32 %v794, 16
      %v951 = vrot.slane %v949, 2
      %v952 = vor.u32 %v948, %v951
      %v953 = vsel %vm927, %v943, %v952
      %v955 = vshrl.u32 %v795, 16
      %v957 = vrot.slane %v955, 1
      %v958 = vshll.u32 %v795, 16
      %v960 = vrot.slane %v958, 2
      %v961 = vor.u32 %v957, %v960
      %v962 = vsel %vm927, %v952, %v961
      %v964 = vshrl.u32 %v796, 16
      %v966 = vrot.slane %v964, 1
      %v967 = vshll.u32 %v796, 16
      %v969 = vrot.slane %v967, 2
      %v970 = vor.u32 %v966, %v969
      %v971 = vsel %vm927, %v961, %v970
      %v973 = vshrl.u32 %v926, 16
      %v975 = vrot.slane %v973, 1
      %v976 = vshll.u32 %v926, 16
      %v978 = vrot.slane %v976, 2
      %v979 = vor.u32 %v975, %v978
      %v980 = vsel %vm927, %v970, %v979
      %v1002 = vunpack.c.l.b16 %v908
      %v1003 = vunpack.c.l.b16 %v909
      %v1004 = vunpack.c.l.b16 %v910
      %v1005 = vunpack.c.l.b16 %v911
      %v1006 = vunpack.c.l.b16 %v912
      %v1007 = vunpack.c.l.b16 %v913
      %v1008 = vunpack.c.l.b16 %v914
      %v1009 = vunpack.c.l.b16 %v915
      %v1010 = vunpack.c.l.b16 %v916
      %v1011 = vunpack.c.l.b16 %v917
      %v1012 = vunpack.c.l.b16 %v918
      %v1013 = vunpack.c.l.b16 %v919
      %v1014 = vunpack.c.l.b16 %v920
      %v1015 = vunpack.c.l.b16 %v921
      %v1016 = vunpack.c.l.b16 %v922
      %v1017 = vunpack.c.l.b16 %v923
      %v1018 = vpack.c.b16 %v1003, %v1002
      %v1019 = vpack.c.b16 %v1005, %v1004
      %v1020 = vpack.c.b16 %v1007, %v1006
      %v1021 = vpack.c.b16 %v1009, %v1008
      %v1022 = vpack.c.b16 %v1011, %v1010
      %v1023 = vpack.c.b16 %v1013, %v1012
      %v1024 = vpack.c.b16 %v1015, %v1014
      %v1025 = vpack.c.b16 %v1017, %v1016
      %1034 = vmatpush.bf16.msra.mxu0 %v1025
      %1035 = vmatpush.bf16.msra.mxu0 %v1024
      %1036 = vmatpush.bf16.msra.mxu0 %v1023
      %1037 = vmatpush.bf16.msra.mxu0 %v1022
      %1038 = vmatpush.bf16.msra.mxu0 %v1021
      %1039 = vmatpush.bf16.msra.mxu0 %v1020
      %1040 = vmatpush.bf16.msra.mxu0 %v1019
      %1041 = vmatpush.bf16.msra.mxu0 %v1018
      %1042 = vmatmul.bf16.gmra.mxu0 %v944
      %v1043 = vpop.f32.mrf.mxu0
      %v1044 = vadd.f32 0.0, %v1043
      %v1045 = vpop.f32.mrf.mxu0
      %v1046 = vadd.f32 0.0, %v1045
      %1047 = vmatmul.bf16.gmra.mxu0 %v953
      %v1048 = vpop.f32.mrf.mxu0
      %v1049 = vadd.f32 0.0, %v1048
      %v1050 = vpop.f32.mrf.mxu0
      %v1051 = vadd.f32 0.0, %v1050
      %1052 = vmatmul.bf16.gmra.mxu0 %v962
      %v1053 = vpop.f32.mrf.mxu0
      %v1054 = vadd.f32 0.0, %v1053
      %v1055 = vpop.f32.mrf.mxu0
      %v1056 = vadd.f32 0.0, %v1055
      %1057 = vmatmul.bf16.gmra.mxu0 %v971
      %v1058 = vpop.f32.mrf.mxu0
      %v1059 = vadd.f32 0.0, %v1058
      %v1060 = vpop.f32.mrf.mxu0
      %v1061 = vadd.f32 0.0, %v1060
      %1062 = vmatmul.bf16.gmra.mxu0 %v980
      %v1063 = vpop.f32.mrf.mxu0
      %v1064 = vadd.f32 0.0, %v1063
      %v1065 = vpop.f32.mrf.mxu0
      %v1066 = vadd.f32 0.0, %v1065
      %1067 = vdwg.mxu0
      %v1068 = vadd.f32 %v896, %v1044
      %v1069 = vadd.f32 %v897, %v1046
      %v1070 = vadd.f32 %v898, %v1049
      %v1071 = vadd.f32 %v899, %v1051
      %v1072 = vadd.f32 %v900, %v1054
      %v1073 = vadd.f32 %v901, %v1056
      %v1074 = vadd.f32 %v902, %v1059
      %v1075 = vadd.f32 %v903, %v1061
      %v1076 = vadd.f32 %v904, %v1064
      %v1077 = vadd.f32 %v905, %v1066
      %v1078 = vld [vmem:[%s294 + $0x4] sm:$0xc]
      %s1079 = scalar_lea.vmem %s298, 320
      %v1080 = vld [vmem:[%s1079] sm:$0xf]
      %v1081 = vld [vmem:[%s1079 + $0x4] sm:$0xf]
      %v1082 = vld [vmem:[%s1079 + $0x8] sm:$0xf]
      %v1083 = vld [vmem:[%s1079 + $0xc] sm:$0xf]
      %v1084 = vld [vmem:[%s1079 + $0x10] sm:$0xf]
      %v1085 = vld [vmem:[%s1079 + $0x14] sm:$0xf]
      %v1086 = vld [vmem:[%s1079 + $0x18] sm:$0xf]
      %v1087 = vld [vmem:[%s1079 + $0x1c] sm:$0xf]
      %v1088 = vld [vmem:[%s1079 + $0x20] sm:$0xf]
      %v1089 = vld [vmem:[%s1079 + $0x24] sm:$0xf]
      %v1090 = vld [vmem:[%s1079 + $0x28] sm:$0xf]
      %v1091 = vld [vmem:[%s1079 + $0x2c] sm:$0xf]
      %v1092 = vld [vmem:[%s1079 + $0x30] sm:$0xf]
      %v1093 = vld [vmem:[%s1079 + $0x34] sm:$0xf]
      %v1094 = vld [vmem:[%s1079 + $0x38] sm:$0xf]
      %v1095 = vld [vmem:[%s1079 + $0x3c] sm:$0xf]
      %v1097 = vunpack.c.l.b16 %v1078
      %v1098 = vpack.c.b16 %v782, %v1097
      %vm1099 = vcmask 1045504
      %v1100 = vrot.slane %v1098, 2
      %v1101 = vrot.slane %v793, 2
      %v1102 = vsel %vm1099, %v1100, %v1101
      %v1103 = vrot.slane %v794, 2
      %v1104 = vsel %vm1099, %v1101, %v1103
      %v1105 = vrot.slane %v795, 2
      %v1106 = vsel %vm1099, %v1103, %v1105
      %v1107 = vrot.slane %v796, 2
      %v1108 = vsel %vm1099, %v1105, %v1107
      %v1109 = vrot.slane %v926, 2
      %v1110 = vsel %vm1099, %v1107, %v1109
      %v1132 = vunpack.c.l.b16 %v1080
      %v1133 = vunpack.c.l.b16 %v1081
      %v1134 = vunpack.c.l.b16 %v1082
      %v1135 = vunpack.c.l.b16 %v1083
      %v1136 = vunpack.c.l.b16 %v1084
      %v1137 = vunpack.c.l.b16 %v1085
      %v1138 = vunpack.c.l.b16 %v1086
      %v1139 = vunpack.c.l.b16 %v1087
      %v1140 = vunpack.c.l.b16 %v1088
      %v1141 = vunpack.c.l.b16 %v1089
      %v1142 = vunpack.c.l.b16 %v1090
      %v1143 = vunpack.c.l.b16 %v1091
      %v1144 = vunpack.c.l.b16 %v1092
      %v1145 = vunpack.c.l.b16 %v1093
      %v1146 = vunpack.c.l.b16 %v1094
      %v1147 = vunpack.c.l.b16 %v1095
      %v1148 = vpack.c.b16 %v1133, %v1132
      %v1149 = vpack.c.b16 %v1135, %v1134
      %v1150 = vpack.c.b16 %v1137, %v1136
      %v1151 = vpack.c.b16 %v1139, %v1138
      %v1152 = vpack.c.b16 %v1141, %v1140
      %v1153 = vpack.c.b16 %v1143, %v1142
      %v1154 = vpack.c.b16 %v1145, %v1144
      %v1155 = vpack.c.b16 %v1147, %v1146
      %1164 = vmatpush.bf16.msra.mxu0 %v1155
      %1165 = vmatpush.bf16.msra.mxu0 %v1154
      %1166 = vmatpush.bf16.msra.mxu0 %v1153
      %1167 = vmatpush.bf16.msra.mxu0 %v1152
      %1168 = vmatpush.bf16.msra.mxu0 %v1151
      %1169 = vmatpush.bf16.msra.mxu0 %v1150
      %1170 = vmatpush.bf16.msra.mxu0 %v1149
      %1171 = vmatpush.bf16.msra.mxu0 %v1148
      %1172 = vmatmul.bf16.gmra.mxu0 %v1102
      %v1173 = vpop.f32.mrf.mxu0
      %v1174 = vadd.f32 0.0, %v1173
      %v1175 = vpop.f32.mrf.mxu0
      %v1176 = vadd.f32 0.0, %v1175
      %1177 = vmatmul.bf16.gmra.mxu0 %v1104
      %v1178 = vpop.f32.mrf.mxu0
      %v1179 = vadd.f32 0.0, %v1178
      %v1180 = vpop.f32.mrf.mxu0
      %v1181 = vadd.f32 0.0, %v1180
      %1182 = vmatmul.bf16.gmra.mxu0 %v1106
      %v1183 = vpop.f32.mrf.mxu0
      %v1184 = vadd.f32 0.0, %v1183
      %v1185 = vpop.f32.mrf.mxu0
      %v1186 = vadd.f32 0.0, %v1185
      %1187 = vmatmul.bf16.gmra.mxu0 %v1108
      %v1188 = vpop.f32.mrf.mxu0
      %v1189 = vadd.f32 0.0, %v1188
      %v1190 = vpop.f32.mrf.mxu0
      %v1191 = vadd.f32 0.0, %v1190
      %1192 = vmatmul.bf16.gmra.mxu0 %v1110
      %v1193 = vpop.f32.mrf.mxu0
      %v1194 = vadd.f32 0.0, %v1193
      %v1195 = vpop.f32.mrf.mxu0
      %v1196 = vadd.f32 0.0, %v1195
      %1197 = vdwg.mxu0
      %v1198 = vadd.f32 %v1068, %v1174
      %v1199 = vadd.f32 %v1069, %v1176
      %v1200 = vadd.f32 %v1070, %v1179
      %v1201 = vadd.f32 %v1071, %v1181
      %v1202 = vadd.f32 %v1072, %v1184
      %v1203 = vadd.f32 %v1073, %v1186
      %v1204 = vadd.f32 %v1074, %v1189
      %v1205 = vadd.f32 %v1075, %v1191
      %v1206 = vadd.f32 %v1076, %v1194
      %v1207 = vadd.f32 %v1077, %v1196
      %v1208 = vld [vmem:[%s294 + $0x8] sm:$0xc]
      %v1209 = vld [vmem:[%s294 + $0xc] sm:$0xf]
      %v1210 = vld [vmem:[%s294 + $0x10] sm:$0xf]
      %v1211 = vld [vmem:[%s294 + $0x14] sm:$0xf]
      %v1212 = vld [vmem:[%s294 + $0x18] sm:$0xf]
      %v1213 = vld [vmem:[%s294 + $0x1c] sm:$0xf]
      %v1214 = vld [vmem:[%s294 + $0x20] sm:$0xf]
      %v1215 = vld [vmem:[%s294 + $0x24] sm:$0xf]
      %v1216 = vld [vmem:[%s294 + $0x28] sm:$0xf]
      %v1217 = vld [vmem:[%s294 + $0x2c] sm:$0xf]
      %v1218 = vld [vmem:[%s294 + $0x30] sm:$0x3]
      %s1219 = scalar_lea.vmem %s298, 384
      %v1220 = vld [vmem:[%s1219] sm:$0xf]
      %v1221 = vld [vmem:[%s1219 + $0x4] sm:$0xf]
      %v1222 = vld [vmem:[%s1219 + $0x8] sm:$0xf]
      %v1223 = vld [vmem:[%s1219 + $0xc] sm:$0xf]
      %v1224 = vld [vmem:[%s1219 + $0x10] sm:$0xf]
      %v1225 = vld [vmem:[%s1219 + $0x14] sm:$0xf]
      %v1226 = vld [vmem:[%s1219 + $0x18] sm:$0xf]
      %v1227 = vld [vmem:[%s1219 + $0x1c] sm:$0xf]
      %v1228 = vld [vmem:[%s1219 + $0x20] sm:$0xf]
      %v1229 = vld [vmem:[%s1219 + $0x24] sm:$0xf]
      %v1230 = vld [vmem:[%s1219 + $0x28] sm:$0xf]
      %v1231 = vld [vmem:[%s1219 + $0x2c] sm:$0xf]
      %v1232 = vld [vmem:[%s1219 + $0x30] sm:$0xf]
      %v1233 = vld [vmem:[%s1219 + $0x34] sm:$0xf]
      %v1234 = vld [vmem:[%s1219 + $0x38] sm:$0xf]
      %v1235 = vld [vmem:[%s1219 + $0x3c] sm:$0xf]
      %v1247 = vunpack.c.l.b16 %v1208
      %v1248 = vunpack.c.l.b16 %v1209
      %v1249 = vunpack.c.l.b16 %v1210
      %v1250 = vunpack.c.l.b16 %v1211
      %v1251 = vunpack.c.l.b16 %v1212
      %v1252 = vunpack.c.l.b16 %v1213
      %v1253 = vunpack.c.l.b16 %v1214
      %v1254 = vunpack.c.l.b16 %v1215
      %v1255 = vunpack.c.l.b16 %v1216
      %v1256 = vunpack.c.l.b16 %v1217
      %v1257 = vunpack.c.l.b16 %v1218
      %v1258 = vpack.c.b16 %v1248, %v1247
      %v1259 = vpack.c.b16 %v1250, %v1249
      %v1260 = vpack.c.b16 %v1252, %v1251
      %v1261 = vpack.c.b16 %v1254, %v1253
      %v1262 = vpack.c.b16 %v1256, %v1255
      %v1263 = vpack.c.b16 %v1257, %v1257
      %v1264 = vrot.slane %v1258, 2
      %v1265 = vrot.slane %v1259, 2
      %v1266 = vsel %vm1099, %v1264, %v1265
      %v1267 = vrot.slane %v1260, 2
      %v1268 = vsel %vm1099, %v1265, %v1267
      %v1269 = vrot.slane %v1261, 2
      %v1270 = vsel %vm1099, %v1267, %v1269
      %v1271 = vrot.slane %v1262, 2
      %v1272 = vsel %vm1099, %v1269, %v1271
      %v1273 = vrot.slane %v1263, 2
      %v1274 = vsel %vm1099, %v1271, %v1273
      %v1296 = vunpack.c.l.b16 %v1220
      %v1297 = vunpack.c.l.b16 %v1221
      %v1298 = vunpack.c.l.b16 %v1222
      %v1299 = vunpack.c.l.b16 %v1223
      %v1300 = vunpack.c.l.b16 %v1224
      %v1301 = vunpack.c.l.b16 %v1225
      %v1302 = vunpack.c.l.b16 %v1226
      %v1303 = vunpack.c.l.b16 %v1227
      %v1304 = vunpack.c.l.b16 %v1228
      %v1305 = vunpack.c.l.b16 %v1229
      %v1306 = vunpack.c.l.b16 %v1230
      %v1307 = vunpack.c.l.b16 %v1231
      %v1308 = vunpack.c.l.b16 %v1232
      %v1309 = vunpack.c.l.b16 %v1233
      %v1310 = vunpack.c.l.b16 %v1234
      %v1311 = vunpack.c.l.b16 %v1235
      %v1312 = vpack.c.b16 %v1297, %v1296
      %v1313 = vpack.c.b16 %v1299, %v1298
      %v1314 = vpack.c.b16 %v1301, %v1300
      %v1315 = vpack.c.b16 %v1303, %v1302
      %v1316 = vpack.c.b16 %v1305, %v1304
      %v1317 = vpack.c.b16 %v1307, %v1306
      %v1318 = vpack.c.b16 %v1309, %v1308
      %v1319 = vpack.c.b16 %v1311, %v1310
      %1328 = vmatpush.bf16.msra.mxu0 %v1319
      %1329 = vmatpush.bf16.msra.mxu0 %v1318
      %1330 = vmatpush.bf16.msra.mxu0 %v1317
      %1331 = vmatpush.bf16.msra.mxu0 %v1316
      %1332 = vmatpush.bf16.msra.mxu0 %v1315
      %1333 = vmatpush.bf16.msra.mxu0 %v1314
      %1334 = vmatpush.bf16.msra.mxu0 %v1313
      %1335 = vmatpush.bf16.msra.mxu0 %v1312
      %1336 = vmatmul.bf16.gmra.mxu0 %v1266
      %v1337 = vpop.f32.mrf.mxu0
      %v1338 = vadd.f32 0.0, %v1337
      %v1339 = vpop.f32.mrf.mxu0
      %v1340 = vadd.f32 0.0, %v1339
      %1341 = vmatmul.bf16.gmra.mxu0 %v1268
      %v1342 = vpop.f32.mrf.mxu0
      %v1343 = vadd.f32 0.0, %v1342
      %v1344 = vpop.f32.mrf.mxu0
      %v1345 = vadd.f32 0.0, %v1344
      %1346 = vmatmul.bf16.gmra.mxu0 %v1270
      %v1347 = vpop.f32.mrf.mxu0
      %v1348 = vadd.f32 0.0, %v1347
      %v1349 = vpop.f32.mrf.mxu0
      %v1350 = vadd.f32 0.0, %v1349
      %1351 = vmatmul.bf16.gmra.mxu0 %v1272
      %v1352 = vpop.f32.mrf.mxu0
      %v1353 = vadd.f32 0.0, %v1352
      %v1354 = vpop.f32.mrf.mxu0
      %v1355 = vadd.f32 0.0, %v1354
      %1356 = vmatmul.bf16.gmra.mxu0 %v1274
      %v1357 = vpop.f32.mrf.mxu0
      %v1358 = vadd.f32 0.0, %v1357
      %v1359 = vpop.f32.mrf.mxu0
      %v1360 = vadd.f32 0.0, %v1359
      %1361 = vdwg.mxu0
      %v1362 = vadd.f32 %v1198, %v1338
      %v1363 = vadd.f32 %v1199, %v1340
      %v1364 = vadd.f32 %v1200, %v1343
      %v1365 = vadd.f32 %v1201, %v1345
      %v1366 = vadd.f32 %v1202, %v1348
      %v1367 = vadd.f32 %v1203, %v1350
      %v1368 = vadd.f32 %v1204, %v1353
      %v1369 = vadd.f32 %v1205, %v1355
      %v1370 = vadd.f32 %v1206, %v1358
      %v1371 = vadd.f32 %v1207, %v1360
      %v1372 = vld [vmem:[%s294 + $0x30] sm:$0x7]
      %s1373 = scalar_lea.vmem %s298, 448
      %v1374 = vld [vmem:[%s1373] sm:$0xf]
      %v1375 = vld [vmem:[%s1373 + $0x4] sm:$0xf]
      %v1376 = vld [vmem:[%s1373 + $0x8] sm:$0xf]
      %v1377 = vld [vmem:[%s1373 + $0xc] sm:$0xf]
      %v1378 = vld [vmem:[%s1373 + $0x10] sm:$0xf]
      %v1379 = vld [vmem:[%s1373 + $0x14] sm:$0xf]
      %v1380 = vld [vmem:[%s1373 + $0x18] sm:$0xf]
      %v1381 = vld [vmem:[%s1373 + $0x1c] sm:$0xf]
      %v1382 = vld [vmem:[%s1373 + $0x20] sm:$0xf]
      %v1383 = vld [vmem:[%s1373 + $0x24] sm:$0xf]
      %v1384 = vld [vmem:[%s1373 + $0x28] sm:$0xf]
      %v1385 = vld [vmem:[%s1373 + $0x2c] sm:$0xf]
      %v1386 = vld [vmem:[%s1373 + $0x30] sm:$0xf]
      %v1387 = vld [vmem:[%s1373 + $0x34] sm:$0xf]
      %v1388 = vld [vmem:[%s1373 + $0x38] sm:$0xf]
      %v1389 = vld [vmem:[%s1373 + $0x3c] sm:$0xf]
      %v1391 = vunpack.c.l.b16 %v1372
      %v1392 = vpack.c.b16 %v1391, %v1391
      %vm1393 = vsmask.f32 5376
      %v1395 = vshrl.u32 %v1258, 16
      %v1397 = vrot.slane %v1395, 2
      %v1398 = vshll.u32 %v1258, 16
      %v1400 = vrot.slane %v1398, 3
      %v1401 = vor.u32 %v1397, %v1400
      %v1403 = vshrl.u32 %v1259, 16
      %v1405 = vrot.slane %v1403, 2
      %v1406 = vshll.u32 %v1259, 16
      %v1408 = vrot.slane %v1406, 3
      %v1409 = vor.u32 %v1405, %v1408
      %v1410 = vsel %vm1393, %v1401, %v1409
      %v1412 = vshrl.u32 %v1260, 16
      %v1414 = vrot.slane %v1412, 2
      %v1415 = vshll.u32 %v1260, 16
      %v1417 = vrot.slane %v1415, 3
      %v1418 = vor.u32 %v1414, %v1417
      %v1419 = vsel %vm1393, %v1409, %v1418
      %v1421 = vshrl.u32 %v1261, 16
      %v1423 = vrot.slane %v1421, 2
      %v1424 = vshll.u32 %v1261, 16
      %v1426 = vrot.slane %v1424, 3
      %v1427 = vor.u32 %v1423, %v1426
      %v1428 = vsel %vm1393, %v1418, %v1427
      %v1430 = vshrl.u32 %v1262, 16
      %v1432 = vrot.slane %v1430, 2
      %v1433 = vshll.u32 %v1262, 16
      %v1435 = vrot.slane %v1433, 3
      %v1436 = vor.u32 %v1432, %v1435
      %v1437 = vsel %vm1393, %v1427, %v1436
      %v1439 = vshrl.u32 %v1392, 16
      %v1441 = vrot.slane %v1439, 2
      %v1442 = vshll.u32 %v1392, 16
      %v1444 = vrot.slane %v1442, 3
      %v1445 = vor.u32 %v1441, %v1444
      %v1446 = vsel %vm1393, %v1436, %v1445
      %v1468 = vunpack.c.l.b16 %v1374
      %v1469 = vunpack.c.l.b16 %v1375
      %v1470 = vunpack.c.l.b16 %v1376
      %v1471 = vunpack.c.l.b16 %v1377
      %v1472 = vunpack.c.l.b16 %v1378
      %v1473 = vunpack.c.l.b16 %v1379
      %v1474 = vunpack.c.l.b16 %v1380
      %v1475 = vunpack.c.l.b16 %v1381
      %v1476 = vunpack.c.l.b16 %v1382
      %v1477 = vunpack.c.l.b16 %v1383
      %v1478 = vunpack.c.l.b16 %v1384
      %v1479 = vunpack.c.l.b16 %v1385
      %v1480 = vunpack.c.l.b16 %v1386
      %v1481 = vunpack.c.l.b16 %v1387
      %v1482 = vunpack.c.l.b16 %v1388
      %v1483 = vunpack.c.l.b16 %v1389
      %v1484 = vpack.c.b16 %v1469, %v1468
      %v1485 = vpack.c.b16 %v1471, %v1470
      %v1486 = vpack.c.b16 %v1473, %v1472
      %v1487 = vpack.c.b16 %v1475, %v1474
      %v1488 = vpack.c.b16 %v1477, %v1476
      %v1489 = vpack.c.b16 %v1479, %v1478
      %v1490 = vpack.c.b16 %v1481, %v1480
      %v1491 = vpack.c.b16 %v1483, %v1482
      %1500 = vmatpush.bf16.msra.mxu0 %v1491
      %1501 = vmatpush.bf16.msra.mxu0 %v1490
      %1502 = vmatpush.bf16.msra.mxu0 %v1489
      %1503 = vmatpush.bf16.msra.mxu0 %v1488
      %1504 = vmatpush.bf16.msra.mxu0 %v1487
      %1505 = vmatpush.bf16.msra.mxu0 %v1486
      %1506 = vmatpush.bf16.msra.mxu0 %v1485
      %1507 = vmatpush.bf16.msra.mxu0 %v1484
      %1508 = vmatmul.bf16.gmra.mxu0 %v1410
      %v1509 = vpop.f32.mrf.mxu0
      %v1510 = vadd.f32 0.0, %v1509
      %v1511 = vpop.f32.mrf.mxu0
      %v1512 = vadd.f32 0.0, %v1511
      %1513 = vmatmul.bf16.gmra.mxu0 %v1419
      %v1514 = vpop.f32.mrf.mxu0
      %v1515 = vadd.f32 0.0, %v1514
      %v1516 = vpop.f32.mrf.mxu0
      %v1517 = vadd.f32 0.0, %v1516
      %1518 = vmatmul.bf16.gmra.mxu0 %v1428
      %v1519 = vpop.f32.mrf.mxu0
      %v1520 = vadd.f32 0.0, %v1519
      %v1521 = vpop.f32.mrf.mxu0
      %v1522 = vadd.f32 0.0, %v1521
      %1523 = vmatmul.bf16.gmra.mxu0 %v1437
      %v1524 = vpop.f32.mrf.mxu0
      %v1525 = vadd.f32 0.0, %v1524
      %v1526 = vpop.f32.mrf.mxu0
      %v1527 = vadd.f32 0.0, %v1526
      %1528 = vmatmul.bf16.gmra.mxu0 %v1446
      %v1529 = vpop.f32.mrf.mxu0
      %v1530 = vadd.f32 0.0, %v1529
      %v1531 = vpop.f32.mrf.mxu0
      %v1532 = vadd.f32 0.0, %v1531
      %1533 = vdwg.mxu0
      %v1534 = vadd.f32 %v1362, %v1510
      %v1535 = vadd.f32 %v1363, %v1512
      %v1536 = vadd.f32 %v1364, %v1515
      %v1537 = vadd.f32 %v1365, %v1517
      %v1538 = vadd.f32 %v1366, %v1520
      %v1539 = vadd.f32 %v1367, %v1522
      %v1540 = vadd.f32 %v1368, %v1525
      %v1541 = vadd.f32 %v1369, %v1527
      %v1542 = vadd.f32 %v1370, %v1530
      %v1543 = vadd.f32 %v1371, %v1532
      %v1544 = vld [vmem:[%s294 + $0x8] sm:$0x8]
      %s1545 = scalar_lea.vmem %s298, 512
      %v1546 = vld [vmem:[%s1545] sm:$0xf]
      %v1547 = vld [vmem:[%s1545 + $0x4] sm:$0xf]
      %v1548 = vld [vmem:[%s1545 + $0x8] sm:$0xf]
      %v1549 = vld [vmem:[%s1545 + $0xc] sm:$0xf]
      %v1550 = vld [vmem:[%s1545 + $0x10] sm:$0xf]
      %v1551 = vld [vmem:[%s1545 + $0x14] sm:$0xf]
      %v1552 = vld [vmem:[%s1545 + $0x18] sm:$0xf]
      %v1553 = vld [vmem:[%s1545 + $0x1c] sm:$0xf]
      %v1554 = vld [vmem:[%s1545 + $0x20] sm:$0xf]
      %v1555 = vld [vmem:[%s1545 + $0x24] sm:$0xf]
      %v1556 = vld [vmem:[%s1545 + $0x28] sm:$0xf]
      %v1557 = vld [vmem:[%s1545 + $0x2c] sm:$0xf]
      %v1558 = vld [vmem:[%s1545 + $0x30] sm:$0xf]
      %v1559 = vld [vmem:[%s1545 + $0x34] sm:$0xf]
      %v1560 = vld [vmem:[%s1545 + $0x38] sm:$0xf]
      %v1561 = vld [vmem:[%s1545 + $0x3c] sm:$0xf]
      %v1563 = vunpack.c.l.b16 %v1544
      %v1564 = vpack.c.b16 %v1248, %v1563
      %vm1565 = vcmask 1044480
      %v1566 = vrot.slane %v1564, 3
      %v1567 = vrot.slane %v1259, 3
      %v1568 = vsel %vm1565, %v1566, %v1567
      %v1569 = vrot.slane %v1260, 3
      %v1570 = vsel %vm1565, %v1567, %v1569
      %v1571 = vrot.slane %v1261, 3
      %v1572 = vsel %vm1565, %v1569, %v1571
      %v1573 = vrot.slane %v1262, 3
      %v1574 = vsel %vm1565, %v1571, %v1573
      %v1575 = vrot.slane %v1392, 3
      %v1576 = vsel %vm1565, %v1573, %v1575
      %v1598 = vunpack.c.l.b16 %v1546
      %v1599 = vunpack.c.l.b16 %v1547
      %v1600 = vunpack.c.l.b16 %v1548
      %v1601 = vunpack.c.l.b16 %v1549
      %v1602 = vunpack.c.l.b16 %v1550
      %v1603 = vunpack.c.l.b16 %v1551
      %v1604 = vunpack.c.l.b16 %v1552
      %v1605 = vunpack.c.l.b16 %v1553
      %v1606 = vunpack.c.l.b16 %v1554
      %v1607 = vunpack.c.l.b16 %v1555
      %v1608 = vunpack.c.l.b16 %v1556
      %v1609 = vunpack.c.l.b16 %v1557
      %v1610 = vunpack.c.l.b16 %v1558
      %v1611 = vunpack.c.l.b16 %v1559
      %v1612 = vunpack.c.l.b16 %v1560
      %v1613 = vunpack.c.l.b16 %v1561
      %v1614 = vpack.c.b16 %v1599, %v1598
      %v1615 = vpack.c.b16 %v1601, %v1600
      %v1616 = vpack.c.b16 %v1603, %v1602
      %v1617 = vpack.c.b16 %v1605, %v1604
      %v1618 = vpack.c.b16 %v1607, %v1606
      %v1619 = vpack.c.b16 %v1609, %v1608
      %v1620 = vpack.c.b16 %v1611, %v1610
      %v1621 = vpack.c.b16 %v1613, %v1612
      %1630 = vmatpush.bf16.msra.mxu0 %v1621
      %1631 = vmatpush.bf16.msra.mxu0 %v1620
      %1632 = vmatpush.bf16.msra.mxu0 %v1619
      %1633 = vmatpush.bf16.msra.mxu0 %v1618
      %1634 = vmatpush.bf16.msra.mxu0 %v1617
      %1635 = vmatpush.bf16.msra.mxu0 %v1616
      %1636 = vmatpush.bf16.msra.mxu0 %v1615
      %1637 = vmatpush.bf16.msra.mxu0 %v1614
      %1638 = vmatmul.bf16.gmra.mxu0 %v1568
      %v1639 = vpop.f32.mrf.mxu0
      %v1640 = vadd.f32 0.0, %v1639
      %v1641 = vpop.f32.mrf.mxu0
      %v1642 = vadd.f32 0.0, %v1641
      %1643 = vmatmul.bf16.gmra.mxu0 %v1570
      %v1644 = vpop.f32.mrf.mxu0
      %v1645 = vadd.f32 0.0, %v1644
      %v1646 = vpop.f32.mrf.mxu0
      %v1647 = vadd.f32 0.0, %v1646
      %1648 = vmatmul.bf16.gmra.mxu0 %v1572
      %v1649 = vpop.f32.mrf.mxu0
      %v1650 = vadd.f32 0.0, %v1649
      %v1651 = vpop.f32.mrf.mxu0
      %v1652 = vadd.f32 0.0, %v1651
      %1653 = vmatmul.bf16.gmra.mxu0 %v1574
      %v1654 = vpop.f32.mrf.mxu0
      %v1655 = vadd.f32 0.0, %v1654
      %v1656 = vpop.f32.mrf.mxu0
      %v1657 = vadd.f32 0.0, %v1656
      %1658 = vmatmul.bf16.gmra.mxu0 %v1576
      %v1659 = vpop.f32.mrf.mxu0
      %v1660 = vadd.f32 0.0, %v1659
      %v1661 = vpop.f32.mrf.mxu0
      %v1662 = vadd.f32 0.0, %v1661
      %1663 = vdwg.mxu0
      %v1664 = vadd.f32 %v1534, %v1640
      %v1665 = vadd.f32 %v1535, %v1642
      %v1666 = vadd.f32 %v1536, %v1645
      %v1667 = vadd.f32 %v1537, %v1647
      %v1668 = vadd.f32 %v1538, %v1650
      %v1669 = vadd.f32 %v1539, %v1652
      %v1670 = vadd.f32 %v1540, %v1655
      %v1671 = vadd.f32 %v1541, %v1657
      %v1672 = vadd.f32 %v1542, %v1660
      %v1673 = vadd.f32 %v1543, %v1662
      %v1674 = vld [vmem:[%s301] sm:$0x1]
      %v1676 = vperm.slane %v1674, 0
      %v1678 = vmul.f32 %v1664, %v1676
      %v1679 = vmul.f32 %v1665, %v1676
      %v1680 = vmul.f32 %v1666, %v1676
      %v1681 = vmul.f32 %v1667, %v1676
      %v1682 = vmul.f32 %v1668, %v1676
      %v1683 = vmul.f32 %v1669, %v1676
      %v1684 = vmul.f32 %v1670, %v1676
      %v1685 = vmul.f32 %v1671, %v1676
      %v1686 = vmul.f32 %v1672, %v1676
      %v1687 = vmul.f32 %v1673, %v1676
      %v1688 = vld [vmem:[%s304] sm:$0x1]
      %v1690 = vperm.slane %v1688, 0
      %v1692 = vadd.f32 %v1678, %v1690
      %v1693 = vadd.f32 %v1679, %v1690
      %v1694 = vadd.f32 %v1680, %v1690
      %v1695 = vadd.f32 %v1681, %v1690
      %v1696 = vadd.f32 %v1682, %v1690
      %v1697 = vadd.f32 %v1683, %v1690
      %v1698 = vadd.f32 %v1684, %v1690
      %v1699 = vadd.f32 %v1685, %v1690
      %v1700 = vadd.f32 %v1686, %v1690
      %v1701 = vadd.f32 %v1687, %v1690
      %v1702 = vld [vmem:[%s312] sm:$0xf]
      %v1703 = vld [vmem:[%s312 + $0x4] sm:$0xf]
      %v1704 = vld [vmem:[%s312 + $0x8] sm:$0xf]
      %v1705 = vld [vmem:[%s312 + $0xc] sm:$0xf]
      %v1706 = vld [vmem:[%s312 + $0x10] sm:$0xf]
      %v1707 = vld [vmem:[%s312 + $0x14] sm:$0xf]
      %v1708 = vld [vmem:[%s312 + $0x18] sm:$0xf]
      %v1709 = vld [vmem:[%s312 + $0x1c] sm:$0xf]
      %v1710 = vld [vmem:[%s312 + $0x20] sm:$0xf]
      %v1711 = vld [vmem:[%s312 + $0x24] sm:$0xf]
      %v1712 = vunpack.c.l.bf16 %v1702
      %v1713 = vunpack.c.l.bf16 %v1703
      %v1714 = vunpack.c.l.bf16 %v1704
      %v1715 = vunpack.c.l.bf16 %v1705
      %v1716 = vunpack.c.l.bf16 %v1706
      %v1717 = vunpack.c.l.bf16 %v1707
      %v1718 = vunpack.c.l.bf16 %v1708
      %v1719 = vunpack.c.l.bf16 %v1709
      %v1720 = vunpack.c.l.bf16 %v1710
      %v1721 = vunpack.c.l.bf16 %v1711
      %v1722 = vadd.f32 %v1692, %v1712
      %v1723 = vadd.f32 %v1693, %v1713
      %v1724 = vadd.f32 %v1694, %v1714
      %v1725 = vadd.f32 %v1695, %v1715
      %v1726 = vadd.f32 %v1696, %v1716
      %v1727 = vadd.f32 %v1697, %v1717
      %v1728 = vadd.f32 %v1698, %v1718
      %v1729 = vadd.f32 %v1699, %v1719
      %v1730 = vadd.f32 %v1700, %v1720
      %v1731 = vadd.f32 %v1701, %v1721
      %v1732 = vmax.f32 %v1722, 0.0
      %v1733 = vmax.f32 %v1723, 0.0
      %v1734 = vmax.f32 %v1724, 0.0
      %v1735 = vmax.f32 %v1725, 0.0
      %v1736 = vmax.f32 %v1726, 0.0
      %v1737 = vmax.f32 %v1727, 0.0
      %v1738 = vmax.f32 %v1728, 0.0
      %v1739 = vmax.f32 %v1729, 0.0
      %v1740 = vmax.f32 %v1730, 0.0
      %v1741 = vmax.f32 %v1731, 0.0
      %1742 = vst [vmem:[%s320] sm:$0xff] %v1732
      %1743 = vst [vmem:[%s320 + $0x8] sm:$0xff] %v1733
      %1744 = vst [vmem:[%s320 + $0x10] sm:$0xff] %v1734
      %1745 = vst [vmem:[%s320 + $0x18] sm:$0xff] %v1735
      %1746 = vst [vmem:[%s320 + $0x20] sm:$0xff] %v1736
      %1747 = vst [vmem:[%s320 + $0x28] sm:$0xff] %v1737
      %1748 = vst [vmem:[%s320 + $0x30] sm:$0xff] %v1738
      %1749 = vst [vmem:[%s320 + $0x38] sm:$0xff] %v1739
      %1750 = vst [vmem:[%s320 + $0x40] sm:$0xff] %v1740
      %1751 = vst [vmem:[%s320 + $0x48] sm:$0xff] %v1741
      %p1752 = scmp.lt.s32.totalorder %s20, 1
      %s1753 = scalar_select %p1752, %s20, 1
      %p1754 = scmp.lt.s32.totalorder %s21, 0
      %s1755 = scalar_select %p1754, %s21, 0
      %s1756 = smul.addr %s1753, 10
      %s1757 = sadd.s32 %s1755, %s1756
      %s1758 = smul.addr %s1757, 8
      %s1759 = scalar_lea.vmem %s5, %s1758
      // Predicated region
      $region41: #{basic_block_forward.5} parent=39 // pred_check
        %p1760 = pneg %p180
      $region42: #{basic_block_forward.5} parent=39 // pred_check_branch
        %1762 = sbr.rel (%p1760) target = $region44
      $region43: #{basic_block_forward.5} parent=39 // pred_region
        _
      $region44: #{basic_block_forward.5} parent=39 // pred_fallthru
        _
    $region40: #{basic_block_forward.5} parent=5 // pred_fallthru
      _
    %p1763 = scmp.le.s32.totalorder 2, %s11
    // Predicated region
    $region45: #{basic_block_forward.5} parent=5 // pred_check
      %p1764 = pneg %p1763
    $region46: #{basic_block_forward.5} parent=5 // pred_check_branch
      %1766 = sbr.rel (%p1764) target = $region48
    $region47: #{basic_block_forward.5} parent=5 // pred_region
      %s1767 = ssub.s32 %s11, 2
      // Predicated region
      $region49: #{basic_block_forward.5} parent=47 // pred_check
        %p1768 = pneg %p186
      $region50: #{basic_block_forward.5} parent=47 // pred_check_branch
        %1770 = sbr.rel (%p1768) target = $region52
      $region51: #{basic_block_forward.5} parent=47 // pred_region
        %p1771 = scmp.lt.s32.totalorder %s22, 1
        %s1772 = scalar_select %p1771, %s22, 1
        %p1773 = scmp.lt.s32.totalorder %s23, 0
        %s1774 = scalar_select %p1773, %s23, 0
        %s1775 = smul.addr %s1772, 10
        %s1776 = sadd.s32 %s1774, %s1775
        %s1777 = smul.addr %s1776, 8
        %s1778 = scalar_lea.vmem %s5, %s1777
      $region52: #{basic_block_forward.5} parent=47 // pred_fallthru
        _
    $region48: #{basic_block_forward.5} parent=5 // pred_fallthru
      _
  $region6: #{basic_block_forward.5} parent=0 // loop_footer
    %s15 = sadd.s32 1, %s11
  $region7: #{basic_block_forward.5} parent=0 // loop_footer_branch
    %10 = sbr.rel target = $region3
  $region8: #{basic_block_forward.5} parent=0 // loop_exit
    _

</llo_original>
